<compile_context>
chip_gen: v7x
topology: tpu7x:2x2x1
jax: 0.10.0
libtpu: 0.0.40
codegen_flags: <defaults>
</compile_context>

<pallas_src>
import jax
import jax.numpy as jnp
from jax import lax
from jax.experimental import pallas as pl
from jax.experimental.pallas import tpu as pltpu


_LANE = 128


def _round_up(n: int, m: int) -> int:
    return ((n + m - 1) // m) * m


def _cdiv(a: int, b: int) -> int:
    return (a + b - 1) // b


def _vmem_capacity_bytes() -> int:
    """Best-effort VMEM capacity query; 0 means unknown (treated as v7x-sized)."""
    try:
        return int(pltpu.get_tpu_info().vmem_capacity_bytes)
    except Exception:
        return 0


# --------------------------------------------------------------------------- #
# Kernels
# --------------------------------------------------------------------------- #
def _single_tile_kernel(x_ref, v_ref, o_ref):
    """D fits one tile: (1, D) . (TB, D)^T -> (1, TB), straight store."""
    o_ref[...] = lax.dot_general(
        v_ref[...],
        x_ref[...],
        dimension_numbers=(((1,), (1,)), ((), ())),
        preferred_element_type=jnp.float32,
    )


def _make_accum_kernel(D: int, TD: int, need_mask: bool):
    """Feature dim tiled: lane-dense (1, TB) resident f32 accumulator."""

    def kernel(x_ref, v_ref, o_ref):
        k = pl.program_id(1)

        @pl.when(k == 0)
        def _init():
            o_ref[...] = jnp.zeros_like(o_ref)

        x = x_ref[...]
        if need_mask:
            # The last feature tile reads past D; OOB lanes are undefined
            # (possibly NaN/Inf) so zero them before they reach the MXU.
            col = k * TD + lax.broadcasted_iota(jnp.int32, x.shape, 1)
            x = jnp.where(col < D, x, jnp.zeros_like(x))

        o_ref[...] += lax.dot_general(
            v_ref[...],
            x,
            dimension_numbers=(((1,), (1,)), ((), ())),
            preferred_element_type=jnp.float32,
        )

    return kernel


# --------------------------------------------------------------------------- #
# Wrapper
# --------------------------------------------------------------------------- #
def linear_dual_variable_forward(x, v, *, tb_max=1024, td_max=8192,
                                 force_pallas=False):
    """x: (B, D) any float dtype, v: (D,) -> (B, 1) float32,
    out[b, 0] = sum_d v[d] * x[b, d]."""
    B, D = x.shape
    assert v.shape == (D,), (v.shape, D)
    itemsize = jnp.dtype(x.dtype).itemsize

    # ---- small-problem gate: XLA's fused reduce wins below ~4 MiB of x -----
    if not force_pallas and B * D * itemsize < (4 << 20):
        return jnp.sum(
            x.astype(jnp.float32) * v.astype(jnp.float32)[None, :],
            axis=1, keepdims=True,
        )

    # ---- generation-aware VMEM budget ---------------------------------------
    vmem = _vmem_capacity_bytes()
    if vmem >= 96 * 1024 * 1024:        # v5e / v6e: 128 MiB physical VMEM
        x_block_budget = 16 << 20
        vmem_limit = 64 << 20
    else:                               # v7x (64 MiB / TC) or unknown
        x_block_budget = 8 << 20
        vmem_limit = 40 << 20

    # ---- batch tile: lane-granular, balanced across megacore ---------------
    TB = _round_up(min(int(tb_max), 1024), _LANE)
    TB = min(TB, _round_up(B, _LANE))
    if _cdiv(B, TB) < 4:
        # Aim for >= 4 batch blocks (>= 2 pipelined steps per v7x core).
        TB = max(_LANE, _round_up(_cdiv(B, 4), _LANE))
    nb = _cdiv(B, TB)

    # ---- feature tile: as big as the VMEM budget allows --------------------
    Dp = _round_up(D, _LANE)
    td_from_budget = max(_LANE, (x_block_budget // (TB * itemsize)) // _LANE * _LANE)
    TD = _round_up(min(int(td_max), td_from_budget, Dp), _LANE)
    if D <= TD:
        TD = D          # full-extent feature block: no OOB lanes, no masking
        nk = 1
    else:
        nk = _cdiv(D, TD)
    need_mask = nk > 1 and (D % TD != 0)

    # ---- v: only the tiny vector is reshaped / zero-padded host-side -------
    v_in = v.astype(x.dtype).reshape(1, D)
    if nk > 1 and nk * TD != D:
        v_in = jnp.pad(v_in, ((0, 0), (0, nk * TD - D)))

    # ---- grid / specs -------------------------------------------------------
    if nk == 1:
        kernel = _single_tile_kernel
        grid = (nb,)
        in_specs = [
            pl.BlockSpec((TB, D), lambda i: (i, 0)),   # x batch tile (native dtype)
            pl.BlockSpec((1, D), lambda i: (0, 0)),    # resident full-extent v
        ]
        out_specs = pl.BlockSpec((1, TB), lambda i: (0, i))
        dims = ("parallel",)
    else:
        kernel = _make_accum_kernel(D, TD, need_mask)
        grid = (nb, nk)                                 # reduction axis last
        in_specs = [
            pl.BlockSpec((TB, TD), lambda i, k: (i, k)),
            pl.BlockSpec((1, TD), lambda i, k: (0, k)),
        ]
        # Constant block index across k => resident lane-dense accumulator.
        out_specs = pl.BlockSpec((1, TB), lambda i, k: (0, i))
        dims = ("parallel", "arbitrary")

    out_2d = pl.pallas_call(
        kernel,
        out_shape=jax.ShapeDtypeStruct((1, B), jnp.float32),
        grid_spec=pltpu.PrefetchScalarGridSpec(
            num_scalar_prefetch=0,
            grid=grid,
            in_specs=in_specs,
            out_specs=out_specs,
        ),
        compiler_params=pltpu.CompilerParams(
            dimension_semantics=dims,
            vmem_limit_bytes=vmem_limit,
        ),
        cost_estimate=pl.CostEstimate(
            flops=2 * B * D,
            transcendentals=0,
            bytes_accessed=itemsize * (B * D + D) + 4 * B,
        ),
    )(x, v_in)

    # (1, B) lane-dense slab -> the module's (B, 1) column.
    return out_2d.reshape(B, 1)


# --------------------------------------------------------------------------- #
# Self-test
# --------------------------------------------------------------------------- #
if __name__ == "__main__":
    key = jax.random.PRNGKey(0)
    keys = jax.random.split(key, 6)

    def ref_fwd(x, v):
        return jnp.sum(
            x.astype(jnp.float32) * v.astype(jnp.float32)[None, :],
            axis=1, keepdims=True,
        )

    # (A) f32, big enough to take the Pallas path through the bytes gate.
    B1, D1 = 2048, 1024
    v1 = jax.random.normal(keys[0], (D1,), dtype=jnp.float32)
    x1 = jax.random.normal(keys[1], (B1, D1), dtype=jnp.float32)
    out1 = jax.block_until_ready(linear_dual_variable_forward(x1, v1))
    ref1 = ref_fwd(x1, v1)
    assert out1.shape == (B1, 1), out1.shape
    # MXU default precision rounds f32 operands through bf16.
    assert jnp.allclose(out1, ref1, atol=2.0, rtol=2e-2), float(
        jnp.max(jnp.abs(out1 - ref1)))

    # (B) Unaligned shapes + forced small tiles: exercises feature-tile lane
    #     masking, the resident accumulator, and partial (masked) batch blocks.
    B2, D2 = 1000, 300
    v2 = jax.random.normal(keys[2], (D2,), dtype=jnp.float32)
    x2 = jax.random.normal(keys[3], (B2, D2), dtype=jnp.float32)
    out2 = jax.block_until_ready(
        linear_dual_variable_forward(x2, v2, tb_max=256, td_max=128,
                                     force_pallas=True))
    ref2 = ref_fwd(x2, v2)
    assert out2.shape == (B2, 1), out2.shape
    assert jnp.allclose(out2, ref2, atol=0.5, rtol=2e-2), float(
        jnp.max(jnp.abs(out2 - ref2)))

    # (C) bf16 activations streamed natively (half the HBM bytes, no host cast).
    B3, D3 = 512, 1024
    v3 = jax.random.normal(keys[4], (D3,), dtype=jnp.float32)
    x3 = jax.random.normal(keys[5], (B3, D3), dtype=jnp.float32).astype(jnp.bfloat16)
    out3 = jax.block_until_ready(
        linear_dual_variable_forward(x3, v3, force_pallas=True))
    ref3 = ref_fwd(x3, v3.astype(jnp.bfloat16))  # kernel casts v to x.dtype
    assert out3.shape == (B3, 1), out3.shape
    assert jnp.allclose(out3, ref3, atol=5e-2, rtol=1e-2), float(
        jnp.max(jnp.abs(out3 - ref3)))

    # (D) Module-default tiny shapes: bytes-gated plain-XLA fallback (exact).
    B4, D4 = 8, 2
    v4 = jax.random.normal(keys[0], (D4,), dtype=jnp.float32)
    x4 = jax.random.normal(keys[1], (B4, D4), dtype=jnp.float32)
    out4 = jax.block_until_ready(linear_dual_variable_forward(x4, v4))
    ref4 = ref_fwd(x4, v4)
    assert out4.shape == (B4, 1), out4.shape
    assert jnp.allclose(out4, ref4, atol=1e-5, rtol=1e-5), (out4, ref4)

    print("KERNEL_OK")
</pallas_src>

<mosaic_0001>
module attributes {stable_mosaic.version = 11 : i64} {
  func.func @_single_tile_kernel(%arg0: i32, %arg1: memref<512x1024xf32, #tpu.memory_space<vmem>>, %arg2: memref<1x1024xf32, #tpu.memory_space<vmem>>, %arg3: memref<1x512xf32, #tpu.memory_space<vmem>>) attributes {dimension_semantics = [#tpu.dimension_semantics<parallel>], iteration_bounds = array<i64: 4>, scalar_prefetch = 0 : i64, scratch_operands = 0 : i64, tpu.core_type = #tpu.core_type<tc>, window_params = [{transform_indices = @transform_0, window_bounds = array<i64: 512, 1024>}, {pipeline_mode = #tpu.pipeline_mode<synchronous>, transform_indices = @transform_1, window_bounds = array<i64: 1, 1024>}, {transform_indices = @transform_2, window_bounds = array<i64: 1, 512>}]} {
    %c0 = arith.constant 0 : index
    %c0_0 = arith.constant 0 : index
    %0 = vector.load %arg2[%c0, %c0_0] : memref<1x1024xf32, #tpu.memory_space<vmem>>, vector<1x1024xf32>
    %c0_1 = arith.constant 0 : index
    %c0_2 = arith.constant 0 : index
    %1 = vector.load %arg1[%c0_1, %c0_2] : memref<512x1024xf32, #tpu.memory_space<vmem>>, vector<512x1024xf32>
    %cst = arith.constant dense<0.000000e+00> : vector<1x512xf32>
    %2 = tpu.matmul %0, %1, %cst {dimension_numbers = #tpu.dot_dimension_numbers<[1], [1], [0], [0], [0, 0, 1, 0], [], []>} : vector<1x1024xf32>, vector<512x1024xf32>, vector<1x512xf32> -> vector<1x512xf32>
    %c0_3 = arith.constant 0 : index
    %c0_4 = arith.constant 0 : index
    %3 = vector.load %arg3[%c0_3, %c0_4] : memref<1x512xf32, #tpu.memory_space<vmem>>, vector<1x512xf32>
    tpu.vector_store %arg3[%c0_3, %c0_4], %2 {strides = array<i32>} : memref<1x512xf32, #tpu.memory_space<vmem>>, vector<1x512xf32>,
    return
  }
  func.func @transform_0(%arg0: i32) -> (i32, i32) {
    %c0_i32 = arith.constant 0 : i32
    %c0_i32_0 = arith.constant 0 : i32
    return %arg0, %c0_i32 : i32, i32
  }
  func.func @transform_1(%arg0: i32) -> (i32, i32) {
    %c0_i32 = arith.constant 0 : i32
    %c0_i32_0 = arith.constant 0 : i32
    %c0_i32_1 = arith.constant 0 : i32
    return %c0_i32, %c0_i32_0 : i32, i32
  }
  func.func @transform_2(%arg0: i32) -> (i32, i32) {
    %c0_i32 = arith.constant 0 : i32
    %c0_i32_0 = arith.constant 0 : i32
    return %c0_i32, %arg0 : i32, i32
  }
}

</mosaic_0001>

<llo_original>
// kernel: tpu_custom_call.1
$region0: #{tpu_custom_call.1}
  #allocation0 [shape = 'u32[]', space=smem, size = 0x4, offset = 0x4, fixed_abs, tag = 'smem constant byte address 0x4 - core index']
  #allocation1 [shape = 'u32[144,128]{1,0:T(1,128)}', space=vmem, size = 0x12000, scoped, tag = 'internal scratch']
  %s0 = inlined_call_operand.hbm [shape: f32[2048,1024], index: 0, kind: input, shape index: {}]
  %s1 = inlined_call_operand.hbm [shape: f32[1,1024], index: 1, kind: input, shape index: {}]
  %s2 = inlined_call_operand.hbm [shape: f32[1,2048], index: 2, kind: output, shape index: {}]
  %s3 = sld [smem:[#allocation0]]
  $region49: #{tpu_custom_call.1} parent=0
    _
  %s5 = ssub.s32 1, %s3
  %s6 = scalar_select 0, %s5, %s3
  $region1: #{tpu_custom_call.1} parent=0
    #allocation2 [shape = 'u8[4194304]{0}', space=vmem, size = 0x400000, scoped, tag = 'input window, operand 0']
    #allocation3 [shape = 's32[2]{0}', space=sflag, size = 0x8, scoped, tag = 'scoped memory for tpu_custom_call.1']
    #allocation4 [shape = 's32[2]{0}', space=sflag, size = 0x8, scoped, tag = 'scoped memory for tpu_custom_call.1']
    #allocation5 [shape = 'u8[4096]{0}', space=vmem, size = 0x1000, scoped, tag = 'input window, operand 1, single buffered']
    #allocation6 [shape = 's32[1]{0}', space=sflag, size = 0x4, scoped, tag = 'scoped memory for tpu_custom_call.1']
    #allocation7 [shape = 'u8[4096]{0}', space=vmem, size = 0x1000, scoped, tag = 'output window, operand 0']
    %7 = vsyncpa [#allocation3], 0
    %s8 = scalar_lea.sflag [#allocation3], 1
    %9 = vsyncpa %s8, 0
    %10 = vsyncpa [#allocation6], 0
    %11 = vsyncpa [#allocation4], 0
    %s12 = scalar_lea.sflag [#allocation4], 1
    %13 = vsyncpa %s12, 0
    loop: start=0, step=1, limit=6
    $region2: #{tpu_custom_call.1} parent=1 // loop_pre_header
      _
    $region3: #{tpu_custom_call.1} parent=1 // loop_header
      %s15 = sphi 0, %s19
      %p16 = scmp.ge.s32.totalorder %s15, 6
      %s25 = sphi 0, %s27
      %s28 = sphi 0, %s25
      %s29 = sphi 0, %s28
      %s45 = sphi 0, %s29
      %s49 = sphi 0, %s49
      %s51 = sphi 0, %s49
      %s52 = sphi 0, %s51
      %s66 = sphi 0, %s52
      %s72 = sphi 0, %s74
      %s75 = sphi 0, %s72
      %s76 = sphi 0, %s75
      %s92 = sphi 0, %s76
    $region4: #{tpu_custom_call.1} parent=1 // loop_header_branch
      %18 = sbr.rel (%p16) target = $region8
    $region5: #{tpu_custom_call.1} parent=1 // loop_body
      %s20 = ssub.s32 %s15, 1
      %s21 = ssub.s32 %s15, 2
      %s22 = sadd.s32 %s15, 1
      %s23 = ssub.s32 %s15, %s22
      %p24 = scmp.eq.s32.totalorder %s23, 0
      %s26 = sadd.s32 %s25, 1
      %s27 = scalar_select %p24, %s25, %s26
      %p30 = pneg %p24
      %p31 = scmp.eq.s32.totalorder %s15, 3
      %p32 = por %p30, %p31
      %p33 = scmp.ne.s32.totalorder %s25, %s28
      %p34 = scmp.eq.s32.totalorder %s15, 0
      %p35 = por %p33, %p34
      %p36 = scmp.ne.s32.totalorder %s25, %s28
      %p37 = scmp.eq.s32.totalorder %s20, 3
      %p38 = por %p36, %p37
      %p39 = scmp.ne.s32.totalorder %s28, %s29
      %p40 = scmp.eq.s32.totalorder %s20, 0
      %p41 = por %p39, %p40
      %p42 = scmp.ne.s32.totalorder %s28, %s29
      %p43 = scmp.eq.s32.totalorder %s21, 3
      %p44 = por %p42, %p43
      %p46 = scmp.ne.s32.totalorder %s29, %s45
      %p47 = scmp.eq.s32.totalorder %s21, 0
      %p48 = por %p46, %p47
      %s50 = sadd.s32 %s49, 1
      %p53 = scmp.eq.s32.totalorder %s15, 3
      %p54 = scmp.ne.s32.totalorder %s49, %s51
      %p55 = scmp.eq.s32.totalorder %s15, 0
      %p56 = por %p54, %p55
      %p57 = scmp.ne.s32.totalorder %s49, %s51
      %p58 = scmp.eq.s32.totalorder %s20, 3
      %p59 = por %p57, %p58
      %p60 = scmp.ne.s32.totalorder %s51, %s52
      %p61 = scmp.eq.s32.totalorder %s20, 0
      %p62 = por %p60, %p61
      %p63 = scmp.ne.s32.totalorder %s51, %s52
      %p64 = scmp.eq.s32.totalorder %s21, 3
      %p65 = por %p63, %p64
      %p67 = scmp.ne.s32.totalorder %s52, %s66
      %p68 = scmp.eq.s32.totalorder %s21, 0
      %p69 = por %p67, %p68
      %s70 = ssub.s32 %s15, %s22
      %p71 = scmp.eq.s32.totalorder %s70, 0
      %s73 = sadd.s32 %s72, 1
      %s74 = scalar_select %p71, %s72, %s73
      %p77 = pneg %p71
      %p78 = scmp.eq.s32.totalorder %s15, 3
      %p79 = por %p77, %p78
      %p80 = scmp.ne.s32.totalorder %s72, %s75
      %p81 = scmp.eq.s32.totalorder %s15, 0
      %p82 = por %p80, %p81
      %p83 = scmp.ne.s32.totalorder %s72, %s75
      %p84 = scmp.eq.s32.totalorder %s20, 3
      %p85 = por %p83, %p84
      %p86 = scmp.ne.s32.totalorder %s75, %s76
      %p87 = scmp.eq.s32.totalorder %s20, 0
      %p88 = por %p86, %p87
      %p89 = scmp.ne.s32.totalorder %s75, %s76
      %p90 = scmp.eq.s32.totalorder %s21, 3
      %p91 = por %p89, %p90
      %p93 = scmp.ne.s32.totalorder %s76, %s92
      %p94 = scmp.eq.s32.totalorder %s21, 0
      %p95 = por %p93, %p94
      %p96 = scmp.le.s32.totalorder 1, %s15
      %p97 = scmp.lt.s32.totalorder %s15, 5
      %p98 = pnand %p96, %p97
      %p99 = pneg %p98
      // Predicated region
      $region9: #{tpu_custom_call.1} parent=5 // pred_check
        _
      $region10: #{tpu_custom_call.1} parent=5 // pred_check_branch
        %101 = sbr.rel (%p98) target = $region12
      $region11: #{tpu_custom_call.1} parent=5 // pred_region
        %s102 = ssub.s32 %s15, 1
        // Predicated region
        $region13: #{tpu_custom_call.1} parent=11 // pred_check
          %p103 = pneg %p62
        $region14: #{tpu_custom_call.1} parent=11 // pred_check_branch
          %105 = sbr.rel (%p103) target = $region16
        $region15: #{tpu_custom_call.1} parent=11 // pred_region
          %s107 = ssub.s32 128, 128
          %108 = vsyncadd [#allocation6], %s107
          %s110 = sshll.u32 [#allocation5], 4
          %s111 = int_to_ptr.vmem [resolvable:$true] %s110
          %113 = dma.hbm_to_vmem [thread:$0]  %s1, 128, %s111, [#allocation6]
        $region16: #{tpu_custom_call.1} parent=11 // pred_fallthru
          _
      $region12: #{tpu_custom_call.1} parent=5 // pred_fallthru
        _
      %p114 = scmp.lt.s32.totalorder %s15, 4
      // Predicated region
      $region17: #{tpu_custom_call.1} parent=5 // pred_check
        %p115 = pneg %p114
      $region18: #{tpu_custom_call.1} parent=5 // pred_check_branch
        %117 = sbr.rel (%p115) target = $region20
      $region19: #{tpu_custom_call.1} parent=5 // pred_region
        // Predicated region
        $region21: #{tpu_custom_call.1} parent=19 // pred_check
          %p118 = pneg %p35
        $region22: #{tpu_custom_call.1} parent=19 // pred_check_branch
          %120 = sbr.rel (%p118) target = $region24
        $region23: #{tpu_custom_call.1} parent=19 // pred_region
          %s121 = sand.u32 %s25, 1
          %s122 = scalar_lea.sflag [#allocation3], %s121
          %s123 = sand.u32 %s25, 1
          %s124 = smul.addr %s123, 4096
          %s125 = scalar_lea.vmem [#allocation2], %s124
          %s126 = smul.u32 64, %s15
          %s128 = ssub.s32 65536, 65536
          %129 = vsyncadd %s122, %s128
          %s130 = smul.addr %s126, 8
          %s131 = smul.addr %s130, 128
          %s132 = scalar_lea.hbm %s0, %s131
          %s133 = sshll.u32 %s125, 4
          %s134 = int_to_ptr.vmem [resolvable:$true] %s133
          %139 = dma.hbm_to_vmem [thread:$0]  %s132, 65536, %s134, %s122, 1024, 1024, 64
        $region24: #{tpu_custom_call.1} parent=19 // pred_fallthru
          _
      $region20: #{tpu_custom_call.1} parent=5 // pred_fallthru
        _
      %p140 = scmp.le.s32.totalorder 1, %s15
      %p141 = scmp.lt.s32.totalorder %s15, 5
      %p142 = pnand %p140, %p141
      %p143 = pneg %p142
      // Predicated region
      $region25: #{tpu_custom_call.1} parent=5 // pred_check
        _
      $region26: #{tpu_custom_call.1} parent=5 // pred_check_branch
        %145 = sbr.rel (%p142) target = $region28
      $region27: #{tpu_custom_call.1} parent=5 // pred_region
        %s146 = ssub.s32 %s15, 1
        %s147 = sand.u32 %s28, 1
        %s148 = scalar_lea.sflag [#allocation3], %s147
        %s149 = sand.u32 %s28, 1
        %s150 = smul.addr %s149, 4096
        %s151 = scalar_lea.vmem [#allocation2], %s150
        // Predicated region
        $region29: #{tpu_custom_call.1} parent=27 // pred_check
          %p152 = pneg %p41
        $region30: #{tpu_custom_call.1} parent=27 // pred_check_branch
          %154 = sbr.rel (%p152) target = $region32
        $region31: #{tpu_custom_call.1} parent=27 // pred_region
          %155 = dma.done %s148, 65536
        $region32: #{tpu_custom_call.1} parent=27 // pred_fallthru
          _
        // Predicated region
        $region33: #{tpu_custom_call.1} parent=27 // pred_check
          %p156 = pneg %p62
        $region34: #{tpu_custom_call.1} parent=27 // pred_check_branch
          %158 = sbr.rel (%p156) target = $region36
        $region35: #{tpu_custom_call.1} parent=27 // pred_region
          %159 = dma.done [#allocation6], 128
        $region36: #{tpu_custom_call.1} parent=27 // pred_fallthru
          _
        %s160 = sand.u32 %s28, 1
        %s161 = scalar_lea.sflag [#allocation3], %s160
        %s162 = sand.u32 %s28, 1
        %s163 = smul.addr %s162, 4096
        %s164 = scalar_lea.vmem [#allocation2], %s163
        %p165 = pneg %p41
        %p166 = pneg %p38
        %p167 = pneg %p62
        %p168 = pneg %p59
        %p169 = pneg %p88
        %p170 = pneg %p85
        %s171 = sand.u32 %s75, 1
        %s172 = scalar_lea.sflag [#allocation4], %s171
        %s173 = sand.u32 %s75, 1
        %s174 = smul.addr %s173, 4
        %s175 = scalar_lea.vmem [#allocation7], %s174
        %s176 = smul.u32 64, %s20
        %s177 = smul.u32 4, %s20
        %v178 = vld [vmem:[#allocation5] sm:$0xff]
        %v179 = vld [vmem:[%s151] sm:$0xff]
        %v180 = vld [vmem:[%s151 + $0x8] sm:$0xff]
        %v181 = vld [vmem:[%s151 + $0x10] sm:$0xff]
        %v182 = vld [vmem:[%s151 + $0x18] sm:$0xff]
        %v183 = vld [vmem:[%s151 + $0x20] sm:$0xff]
        %v184 = vld [vmem:[%s151 + $0x28] sm:$0xff]
        %v185 = vld [vmem:[%s151 + $0x30] sm:$0xff]
        %v186 = vld [vmem:[%s151 + $0x38] sm:$0xff]
        %v187 = vld [vmem:[%s151 + $0x40] sm:$0xff]
        %v188 = vld [vmem:[%s151 + $0x48] sm:$0xff]
        %v189 = vld [vmem:[%s151 + $0x50] sm:$0xff]
        %v190 = vld [vmem:[%s151 + $0x58] sm:$0xff]
        %v191 = vld [vmem:[%s151 + $0x60] sm:$0xff]
        %v192 = vld [vmem:[%s151 + $0x68] sm:$0xff]
        %v193 = vld [vmem:[%s151 + $0x70] sm:$0xff]
        %v194 = vld [vmem:[%s151 + $0x78] sm:$0xff]
        %v195 = vld [vmem:[%s151 + $0x80] sm:$0xff]
        %v196 = vld [vmem:[%s151 + $0x88] sm:$0xff]
        %v197 = vld [vmem:[%s151 + $0x90] sm:$0xff]
        %v198 = vld [vmem:[%s151 + $0x98] sm:$0xff]
        %v199 = vld [vmem:[%s151 + $0xa0] sm:$0xff]
        %v200 = vld [vmem:[%s151 + $0xa8] sm:$0xff]
        %v201 = vld [vmem:[%s151 + $0xb0] sm:$0xff]
        %v202 = vld [vmem:[%s151 + $0xb8] sm:$0xff]
        %v203 = vld [vmem:[%s151 + $0xc0] sm:$0xff]
        %v204 = vld [vmem:[%s151 + $0xc8] sm:$0xff]
        %v205 = vld [vmem:[%s151 + $0xd0] sm:$0xff]
        %v206 = vld [vmem:[%s151 + $0xd8] sm:$0xff]
        %v207 = vld [vmem:[%s151 + $0xe0] sm:$0xff]
        %v208 = vld [vmem:[%s151 + $0xe8] sm:$0xff]
        %v209 = vld [vmem:[%s151 + $0xf0] sm:$0xff]
        %v210 = vld [vmem:[%s151 + $0xf8] sm:$0xff]
        %v211 = vld [vmem:[%s151 + $0x100] sm:$0xff]
        %v212 = vld [vmem:[%s151 + $0x108] sm:$0xff]
        %v213 = vld [vmem:[%s151 + $0x110] sm:$0xff]
        %v214 = vld [vmem:[%s151 + $0x118] sm:$0xff]
        %v215 = vld [vmem:[%s151 + $0x120] sm:$0xff]
        %v216 = vld [vmem:[%s151 + $0x128] sm:$0xff]
        %v217 = vld [vmem:[%s151 + $0x130] sm:$0xff]
        %v218 = vld [vmem:[%s151 + $0x138] sm:$0xff]
        %v219 = vld [vmem:[%s151 + $0x140] sm:$0xff]
        %v220 = vld [vmem:[%s151 + $0x148] sm:$0xff]
        %v221 = vld [vmem:[%s151 + $0x150] sm:$0xff]
        %v222 = vld [vmem:[%s151 + $0x158] sm:$0xff]
        %v223 = vld [vmem:[%s151 + $0x160] sm:$0xff]
        %v224 = vld [vmem:[%s151 + $0x168] sm:$0xff]
        %v225 = vld [vmem:[%s151 + $0x170] sm:$0xff]
        %v226 = vld [vmem:[%s151 + $0x178] sm:$0xff]
        %v227 = vld [vmem:[%s151 + $0x180] sm:$0xff]
        %v228 = vld [vmem:[%s151 + $0x188] sm:$0xff]
        %v229 = vld [vmem:[%s151 + $0x190] sm:$0xff]
        %v230 = vld [vmem:[%s151 + $0x198] sm:$0xff]
        %v231 = vld [vmem:[%s151 + $0x1a0] sm:$0xff]
        %v232 = vld [vmem:[%s151 + $0x1a8] sm:$0xff]
        %v233 = vld [vmem:[%s151 + $0x1b0] sm:$0xff]
        %v234 = vld [vmem:[%s151 + $0x1b8] sm:$0xff]
        %v235 = vld [vmem:[%s151 + $0x1c0] sm:$0xff]
        %v236 = vld [vmem:[%s151 + $0x1c8] sm:$0xff]
        %v237 = vld [vmem:[%s151 + $0x1d0] sm:$0xff]
        %v238 = vld [vmem:[%s151 + $0x1d8] sm:$0xff]
        %v239 = vld [vmem:[%s151 + $0x1e0] sm:$0xff]
        %v240 = vld [vmem:[%s151 + $0x1e8] sm:$0xff]
        %v241 = vld [vmem:[%s151 + $0x1f0] sm:$0xff]
        %v242 = vld [vmem:[%s151 + $0x1f8] sm:$0xff]
        %v243 = vld [vmem:[%s151 + $0x200] sm:$0xff]
        %v244 = vld [vmem:[%s151 + $0x208] sm:$0xff]
        %v245 = vld [vmem:[%s151 + $0x210] sm:$0xff]
        %v246 = vld [vmem:[%s151 + $0x218] sm:$0xff]
        %v247 = vld [vmem:[%s151 + $0x220] sm:$0xff]
        %v248 = vld [vmem:[%s151 + $0x228] sm:$0xff]
        %v249 = vld [vmem:[%s151 + $0x230] sm:$0xff]
        %v250 = vld [vmem:[%s151 + $0x238] sm:$0xff]
        %v251 = vld [vmem:[%s151 + $0x240] sm:$0xff]
        %v252 = vld [vmem:[%s151 + $0x248] sm:$0xff]
        %v253 = vld [vmem:[%s151 + $0x250] sm:$0xff]
        %v254 = vld [vmem:[%s151 + $0x258] sm:$0xff]
        %v255 = vld [vmem:[%s151 + $0x260] sm:$0xff]
        %v256 = vld [vmem:[%s151 + $0x268] sm:$0xff]
        %v257 = vld [vmem:[%s151 + $0x270] sm:$0xff]
        %v258 = vld [vmem:[%s151 + $0x278] sm:$0xff]
        %v259 = vld [vmem:[%s151 + $0x280] sm:$0xff]
        %v260 = vld [vmem:[%s151 + $0x288] sm:$0xff]
        %v261 = vld [vmem:[%s151 + $0x290] sm:$0xff]
        %v262 = vld [vmem:[%s151 + $0x298] sm:$0xff]
        %v263 = vld [vmem:[%s151 + $0x2a0] sm:$0xff]
        %v264 = vld [vmem:[%s151 + $0x2a8] sm:$0xff]
        %v265 = vld [vmem:[%s151 + $0x2b0] sm:$0xff]
        %v266 = vld [vmem:[%s151 + $0x2b8] sm:$0xff]
        %v267 = vld [vmem:[%s151 + $0x2c0] sm:$0xff]
        %v268 = vld [vmem:[%s151 + $0x2c8] sm:$0xff]
        %v269 = vld [vmem:[%s151 + $0x2d0] sm:$0xff]
        %v270 = vld [vmem:[%s151 + $0x2d8] sm:$0xff]
        %v271 = vld [vmem:[%s151 + $0x2e0] sm:$0xff]
        %v272 = vld [vmem:[%s151 + $0x2e8] sm:$0xff]
        %v273 = vld [vmem:[%s151 + $0x2f0] sm:$0xff]
        %v274 = vld [vmem:[%s151 + $0x2f8] sm:$0xff]
        %v275 = vld [vmem:[%s151 + $0x300] sm:$0xff]
        %v276 = vld [vmem:[%s151 + $0x308] sm:$0xff]
        %v277 = vld [vmem:[%s151 + $0x310] sm:$0xff]
        %v278 = vld [vmem:[%s151 + $0x318] sm:$0xff]
        %v279 = vld [vmem:[%s151 + $0x320] sm:$0xff]
        %v280 = vld [vmem:[%s151 + $0x328] sm:$0xff]
        %v281 = vld [vmem:[%s151 + $0x330] sm:$0xff]
        %v282 = vld [vmem:[%s151 + $0x338] sm:$0xff]
        %v283 = vld [vmem:[%s151 + $0x340] sm:$0xff]
        %v284 = vld [vmem:[%s151 + $0x348] sm:$0xff]
        %v285 = vld [vmem:[%s151 + $0x350] sm:$0xff]
        %v286 = vld [vmem:[%s151 + $0x358] sm:$0xff]
        %v287 = vld [vmem:[%s151 + $0x360] sm:$0xff]
        %v288 = vld [vmem:[%s151 + $0x368] sm:$0xff]
        %v289 = vld [vmem:[%s151 + $0x370] sm:$0xff]
        %v290 = vld [vmem:[%s151 + $0x378] sm:$0xff]
        %v291 = vld [vmem:[%s151 + $0x380] sm:$0xff]
        %v292 = vld [vmem:[%s151 + $0x388] sm:$0xff]
        %v293 = vld [vmem:[%s151 + $0x390] sm:$0xff]
        %v294 = vld [vmem:[%s151 + $0x398] sm:$0xff]
        %v295 = vld [vmem:[%s151 + $0x3a0] sm:$0xff]
        %v296 = vld [vmem:[%s151 + $0x3a8] sm:$0xff]
        %v297 = vld [vmem:[%s151 + $0x3b0] sm:$0xff]
        %v298 = vld [vmem:[%s151 + $0x3b8] sm:$0xff]
        %v299 = vld [vmem:[%s151 + $0x3c0] sm:$0xff]
        %v300 = vld [vmem:[%s151 + $0x3c8] sm:$0xff]
        %v301 = vld [vmem:[%s151 + $0x3d0] sm:$0xff]
        %v302 = vld [vmem:[%s151 + $0x3d8] sm:$0xff]
        %v303 = vld [vmem:[%s151 + $0x3e0] sm:$0xff]
        %v304 = vld [vmem:[%s151 + $0x3e8] sm:$0xff]
        %v305 = vld [vmem:[%s151 + $0x3f0] sm:$0xff]
        %v306 = vld [vmem:[%s151 + $0x3f8] sm:$0xff]
        %v307 = vld [vmem:[%s151 + $0x400] sm:$0xff]
        %v308 = vld [vmem:[%s151 + $0x408] sm:$0xff]
        %v309 = vld [vmem:[%s151 + $0x410] sm:$0xff]
        %v310 = vld [vmem:[%s151 + $0x418] sm:$0xff]
        %v311 = vld [vmem:[%s151 + $0x420] sm:$0xff]
        %v312 = vld [vmem:[%s151 + $0x428] sm:$0xff]
        %v313 = vld [vmem:[%s151 + $0x430] sm:$0xff]
        %v314 = vld [vmem:[%s151 + $0x438] sm:$0xff]
        %v315 = vld [vmem:[%s151 + $0x440] sm:$0xff]
        %v316 = vld [vmem:[%s151 + $0x448] sm:$0xff]
        %v317 = vld [vmem:[%s151 + $0x450] sm:$0xff]
        %v318 = vld [vmem:[%s151 + $0x458] sm:$0xff]
        %v319 = vld [vmem:[%s151 + $0x460] sm:$0xff]
        %v320 = vld [vmem:[%s151 + $0x468] sm:$0xff]
        %v321 = vld [vmem:[%s151 + $0x470] sm:$0xff]
        %v322 = vld [vmem:[%s151 + $0x478] sm:$0xff]
        %v323 = vld [vmem:[%s151 + $0x480] sm:$0xff]
        %v324 = vld [vmem:[%s151 + $0x488] sm:$0xff]
        %v325 = vld [vmem:[%s151 + $0x490] sm:$0xff]
        %v326 = vld [vmem:[%s151 + $0x498] sm:$0xff]
        %v327 = vld [vmem:[%s151 + $0x4a0] sm:$0xff]
        %v328 = vld [vmem:[%s151 + $0x4a8] sm:$0xff]
        %v329 = vld [vmem:[%s151 + $0x4b0] sm:$0xff]
        %v330 = vld [vmem:[%s151 + $0x4b8] sm:$0xff]
        %v331 = vld [vmem:[%s151 + $0x4c0] sm:$0xff]
        %v332 = vld [vmem:[%s151 + $0x4c8] sm:$0xff]
        %v333 = vld [vmem:[%s151 + $0x4d0] sm:$0xff]
        %v334 = vld [vmem:[%s151 + $0x4d8] sm:$0xff]
        %v335 = vld [vmem:[%s151 + $0x4e0] sm:$0xff]
        %v336 = vld [vmem:[%s151 + $0x4e8] sm:$0xff]
        %v337 = vld [vmem:[%s151 + $0x4f0] sm:$0xff]
        %v338 = vld [vmem:[%s151 + $0x4f8] sm:$0xff]
        %v339 = vld [vmem:[%s151 + $0x500] sm:$0xff]
        %v340 = vld [vmem:[%s151 + $0x508] sm:$0xff]
        %v341 = vld [vmem:[%s151 + $0x510] sm:$0xff]
        %v342 = vld [vmem:[%s151 + $0x518] sm:$0xff]
        %v343 = vld [vmem:[%s151 + $0x520] sm:$0xff]
        %v344 = vld [vmem:[%s151 + $0x528] sm:$0xff]
        %v345 = vld [vmem:[%s151 + $0x530] sm:$0xff]
        %v346 = vld [vmem:[%s151 + $0x538] sm:$0xff]
        %v347 = vld [vmem:[%s151 + $0x540] sm:$0xff]
        %v348 = vld [vmem:[%s151 + $0x548] sm:$0xff]
        %v349 = vld [vmem:[%s151 + $0x550] sm:$0xff]
        %v350 = vld [vmem:[%s151 + $0x558] sm:$0xff]
        %v351 = vld [vmem:[%s151 + $0x560] sm:$0xff]
        %v352 = vld [vmem:[%s151 + $0x568] sm:$0xff]
        %v353 = vld [vmem:[%s151 + $0x570] sm:$0xff]
        %v354 = vld [vmem:[%s151 + $0x578] sm:$0xff]
        %v355 = vld [vmem:[%s151 + $0x580] sm:$0xff]
        %v356 = vld [vmem:[%s151 + $0x588] sm:$0xff]
        %v357 = vld [vmem:[%s151 + $0x590] sm:$0xff]
        %v358 = vld [vmem:[%s151 + $0x598] sm:$0xff]
        %v359 = vld [vmem:[%s151 + $0x5a0] sm:$0xff]
        %v360 = vld [vmem:[%s151 + $0x5a8] sm:$0xff]
        %v361 = vld [vmem:[%s151 + $0x5b0] sm:$0xff]
        %v362 = vld [vmem:[%s151 + $0x5b8] sm:$0xff]
        %v363 = vld [vmem:[%s151 + $0x5c0] sm:$0xff]
        %v364 = vld [vmem:[%s151 + $0x5c8] sm:$0xff]
        %v365 = vld [vmem:[%s151 + $0x5d0] sm:$0xff]
        %v366 = vld [vmem:[%s151 + $0x5d8] sm:$0xff]
        %v367 = vld [vmem:[%s151 + $0x5e0] sm:$0xff]
        %v368 = vld [vmem:[%s151 + $0x5e8] sm:$0xff]
        %v369 = vld [vmem:[%s151 + $0x5f0] sm:$0xff]
        %v370 = vld [vmem:[%s151 + $0x5f8] sm:$0xff]
        %v371 = vld [vmem:[%s151 + $0x600] sm:$0xff]
        %v372 = vld [vmem:[%s151 + $0x608] sm:$0xff]
        %v373 = vld [vmem:[%s151 + $0x610] sm:$0xff]
        %v374 = vld [vmem:[%s151 + $0x618] sm:$0xff]
        %v375 = vld [vmem:[%s151 + $0x620] sm:$0xff]
        %v376 = vld [vmem:[%s151 + $0x628] sm:$0xff]
        %v377 = vld [vmem:[%s151 + $0x630] sm:$0xff]
        %v378 = vld [vmem:[%s151 + $0x638] sm:$0xff]
        %v379 = vld [vmem:[%s151 + $0x640] sm:$0xff]
        %v380 = vld [vmem:[%s151 + $0x648] sm:$0xff]
        %v381 = vld [vmem:[%s151 + $0x650] sm:$0xff]
        %v382 = vld [vmem:[%s151 + $0x658] sm:$0xff]
        %v383 = vld [vmem:[%s151 + $0x660] sm:$0xff]
        %v384 = vld [vmem:[%s151 + $0x668] sm:$0xff]
        %v385 = vld [vmem:[%s151 + $0x670] sm:$0xff]
        %v386 = vld [vmem:[%s151 + $0x678] sm:$0xff]
        %v387 = vld [vmem:[%s151 + $0x680] sm:$0xff]
        %v388 = vld [vmem:[%s151 + $0x688] sm:$0xff]
        %v389 = vld [vmem:[%s151 + $0x690] sm:$0xff]
        %v390 = vld [vmem:[%s151 + $0x698] sm:$0xff]
        %v391 = vld [vmem:[%s151 + $0x6a0] sm:$0xff]
        %v392 = vld [vmem:[%s151 + $0x6a8] sm:$0xff]
        %v393 = vld [vmem:[%s151 + $0x6b0] sm:$0xff]
        %v394 = vld [vmem:[%s151 + $0x6b8] sm:$0xff]
        %v395 = vld [vmem:[%s151 + $0x6c0] sm:$0xff]
        %v396 = vld [vmem:[%s151 + $0x6c8] sm:$0xff]
        %v397 = vld [vmem:[%s151 + $0x6d0] sm:$0xff]
        %v398 = vld [vmem:[%s151 + $0x6d8] sm:$0xff]
        %v399 = vld [vmem:[%s151 + $0x6e0] sm:$0xff]
        %v400 = vld [vmem:[%s151 + $0x6e8] sm:$0xff]
        %v401 = vld [vmem:[%s151 + $0x6f0] sm:$0xff]
        %v402 = vld [vmem:[%s151 + $0x6f8] sm:$0xff]
        %v403 = vld [vmem:[%s151 + $0x700] sm:$0xff]
        %v404 = vld [vmem:[%s151 + $0x708] sm:$0xff]
        %v405 = vld [vmem:[%s151 + $0x710] sm:$0xff]
        %v406 = vld [vmem:[%s151 + $0x718] sm:$0xff]
        %v407 = vld [vmem:[%s151 + $0x720] sm:$0xff]
        %v408 = vld [vmem:[%s151 + $0x728] sm:$0xff]
        %v409 = vld [vmem:[%s151 + $0x730] sm:$0xff]
        %v410 = vld [vmem:[%s151 + $0x738] sm:$0xff]
        %v411 = vld [vmem:[%s151 + $0x740] sm:$0xff]
        %v412 = vld [vmem:[%s151 + $0x748] sm:$0xff]
        %v413 = vld [vmem:[%s151 + $0x750] sm:$0xff]
        %v414 = vld [vmem:[%s151 + $0x758] sm:$0xff]
        %v415 = vld [vmem:[%s151 + $0x760] sm:$0xff]
        %v416 = vld [vmem:[%s151 + $0x768] sm:$0xff]
        %v417 = vld [vmem:[%s151 + $0x770] sm:$0xff]
        %v418 = vld [vmem:[%s151 + $0x778] sm:$0xff]
        %v419 = vld [vmem:[%s151 + $0x780] sm:$0xff]
        %v420 = vld [vmem:[%s151 + $0x788] sm:$0xff]
        %v421 = vld [vmem:[%s151 + $0x790] sm:$0xff]
        %v422 = vld [vmem:[%s151 + $0x798] sm:$0xff]
        %v423 = vld [vmem:[%s151 + $0x7a0] sm:$0xff]
        %v424 = vld [vmem:[%s151 + $0x7a8] sm:$0xff]
        %v425 = vld [vmem:[%s151 + $0x7b0] sm:$0xff]
        %v426 = vld [vmem:[%s151 + $0x7b8] sm:$0xff]
        %v427 = vld [vmem:[%s151 + $0x7c0] sm:$0xff]
        %v428 = vld [vmem:[%s151 + $0x7c8] sm:$0xff]
        %v429 = vld [vmem:[%s151 + $0x7d0] sm:$0xff]
        %v430 = vld [vmem:[%s151 + $0x7d8] sm:$0xff]
        %v431 = vld [vmem:[%s151 + $0x7e0] sm:$0xff]
        %v432 = vld [vmem:[%s151 + $0x7e8] sm:$0xff]
        %v433 = vld [vmem:[%s151 + $0x7f0] sm:$0xff]
        %v434 = vld [vmem:[%s151 + $0x7f8] sm:$0xff]
        %v435 = vld [vmem:[%s151 + $0x800] sm:$0xff]
        %v436 = vld [vmem:[%s151 + $0x808] sm:$0xff]
        %v437 = vld [vmem:[%s151 + $0x810] sm:$0xff]
        %v438 = vld [vmem:[%s151 + $0x818] sm:$0xff]
        %v439 = vld [vmem:[%s151 + $0x820] sm:$0xff]
        %v440 = vld [vmem:[%s151 + $0x828] sm:$0xff]
        %v441 = vld [vmem:[%s151 + $0x830] sm:$0xff]
        %v442 = vld [vmem:[%s151 + $0x838] sm:$0xff]
        %v443 = vld [vmem:[%s151 + $0x840] sm:$0xff]
        %v444 = vld [vmem:[%s151 + $0x848] sm:$0xff]
        %v445 = vld [vmem:[%s151 + $0x850] sm:$0xff]
        %v446 = vld [vmem:[%s151 + $0x858] sm:$0xff]
        %v447 = vld [vmem:[%s151 + $0x860] sm:$0xff]
        %v448 = vld [vmem:[%s151 + $0x868] sm:$0xff]
        %v449 = vld [vmem:[%s151 + $0x870] sm:$0xff]
        %v450 = vld [vmem:[%s151 + $0x878] sm:$0xff]
        %v451 = vld [vmem:[%s151 + $0x880] sm:$0xff]
        %v452 = vld [vmem:[%s151 + $0x888] sm:$0xff]
        %v453 = vld [vmem:[%s151 + $0x890] sm:$0xff]
        %v454 = vld [vmem:[%s151 + $0x898] sm:$0xff]
        %v455 = vld [vmem:[%s151 + $0x8a0] sm:$0xff]
        %v456 = vld [vmem:[%s151 + $0x8a8] sm:$0xff]
        %v457 = vld [vmem:[%s151 + $0x8b0] sm:$0xff]
        %v458 = vld [vmem:[%s151 + $0x8b8] sm:$0xff]
        %v459 = vld [vmem:[%s151 + $0x8c0] sm:$0xff]
        %v460 = vld [vmem:[%s151 + $0x8c8] sm:$0xff]
        %v461 = vld [vmem:[%s151 + $0x8d0] sm:$0xff]
        %v462 = vld [vmem:[%s151 + $0x8d8] sm:$0xff]
        %v463 = vld [vmem:[%s151 + $0x8e0] sm:$0xff]
        %v464 = vld [vmem:[%s151 + $0x8e8] sm:$0xff]
        %v465 = vld [vmem:[%s151 + $0x8f0] sm:$0xff]
        %v466 = vld [vmem:[%s151 + $0x8f8] sm:$0xff]
        %v467 = vld [vmem:[%s151 + $0x900] sm:$0xff]
        %v468 = vld [vmem:[%s151 + $0x908] sm:$0xff]
        %v469 = vld [vmem:[%s151 + $0x910] sm:$0xff]
        %v470 = vld [vmem:[%s151 + $0x918] sm:$0xff]
        %v471 = vld [vmem:[%s151 + $0x920] sm:$0xff]
        %v472 = vld [vmem:[%s151 + $0x928] sm:$0xff]
        %v473 = vld [vmem:[%s151 + $0x930] sm:$0xff]
        %v474 = vld [vmem:[%s151 + $0x938] sm:$0xff]
        %v475 = vld [vmem:[%s151 + $0x940] sm:$0xff]
        %v476 = vld [vmem:[%s151 + $0x948] sm:$0xff]
        %v477 = vld [vmem:[%s151 + $0x950] sm:$0xff]
        %v478 = vld [vmem:[%s151 + $0x958] sm:$0xff]
        %v479 = vld [vmem:[%s151 + $0x960] sm:$0xff]
        %v480 = vld [vmem:[%s151 + $0x968] sm:$0xff]
        %v481 = vld [vmem:[%s151 + $0x970] sm:$0xff]
        %v482 = vld [vmem:[%s151 + $0x978] sm:$0xff]
        %v483 = vld [vmem:[%s151 + $0x980] sm:$0xff]
        %v484 = vld [vmem:[%s151 + $0x988] sm:$0xff]
        %v485 = vld [vmem:[%s151 + $0x990] sm:$0xff]
        %v486 = vld [vmem:[%s151 + $0x998] sm:$0xff]
        %v487 = vld [vmem:[%s151 + $0x9a0] sm:$0xff]
        %v488 = vld [vmem:[%s151 + $0x9a8] sm:$0xff]
        %v489 = vld [vmem:[%s151 + $0x9b0] sm:$0xff]
        %v490 = vld [vmem:[%s151 + $0x9b8] sm:$0xff]
        %v491 = vld [vmem:[%s151 + $0x9c0] sm:$0xff]
        %v492 = vld [vmem:[%s151 + $0x9c8] sm:$0xff]
        %v493 = vld [vmem:[%s151 + $0x9d0] sm:$0xff]
        %v494 = vld [vmem:[%s151 + $0x9d8] sm:$0xff]
        %v495 = vld [vmem:[%s151 + $0x9e0] sm:$0xff]
        %v496 = vld [vmem:[%s151 + $0x9e8] sm:$0xff]
        %v497 = vld [vmem:[%s151 + $0x9f0] sm:$0xff]
        %v498 = vld [vmem:[%s151 + $0x9f8] sm:$0xff]
        %v499 = vld [vmem:[%s151 + $0xa00] sm:$0xff]
        %v500 = vld [vmem:[%s151 + $0xa08] sm:$0xff]
        %v501 = vld [vmem:[%s151 + $0xa10] sm:$0xff]
        %v502 = vld [vmem:[%s151 + $0xa18] sm:$0xff]
        %v503 = vld [vmem:[%s151 + $0xa20] sm:$0xff]
        %v504 = vld [vmem:[%s151 + $0xa28] sm:$0xff]
        %v505 = vld [vmem:[%s151 + $0xa30] sm:$0xff]
        %v506 = vld [vmem:[%s151 + $0xa38] sm:$0xff]
        %v507 = vld [vmem:[%s151 + $0xa40] sm:$0xff]
        %v508 = vld [vmem:[%s151 + $0xa48] sm:$0xff]
        %v509 = vld [vmem:[%s151 + $0xa50] sm:$0xff]
        %v510 = vld [vmem:[%s151 + $0xa58] sm:$0xff]
        %v511 = vld [vmem:[%s151 + $0xa60] sm:$0xff]
        %v512 = vld [vmem:[%s151 + $0xa68] sm:$0xff]
        %v513 = vld [vmem:[%s151 + $0xa70] sm:$0xff]
        %v514 = vld [vmem:[%s151 + $0xa78] sm:$0xff]
        %v515 = vld [vmem:[%s151 + $0xa80] sm:$0xff]
        %v516 = vld [vmem:[%s151 + $0xa88] sm:$0xff]
        %v517 = vld [vmem:[%s151 + $0xa90] sm:$0xff]
        %v518 = vld [vmem:[%s151 + $0xa98] sm:$0xff]
        %v519 = vld [vmem:[%s151 + $0xaa0] sm:$0xff]
        %v520 = vld [vmem:[%s151 + $0xaa8] sm:$0xff]
        %v521 = vld [vmem:[%s151 + $0xab0] sm:$0xff]
        %v522 = vld [vmem:[%s151 + $0xab8] sm:$0xff]
        %v523 = vld [vmem:[%s151 + $0xac0] sm:$0xff]
        %v524 = vld [vmem:[%s151 + $0xac8] sm:$0xff]
        %v525 = vld [vmem:[%s151 + $0xad0] sm:$0xff]
        %v526 = vld [vmem:[%s151 + $0xad8] sm:$0xff]
        %v527 = vld [vmem:[%s151 + $0xae0] sm:$0xff]
        %v528 = vld [vmem:[%s151 + $0xae8] sm:$0xff]
        %v529 = vld [vmem:[%s151 + $0xaf0] sm:$0xff]
        %v530 = vld [vmem:[%s151 + $0xaf8] sm:$0xff]
        %v531 = vld [vmem:[%s151 + $0xb00] sm:$0xff]
        %v532 = vld [vmem:[%s151 + $0xb08] sm:$0xff]
        %v533 = vld [vmem:[%s151 + $0xb10] sm:$0xff]
        %v534 = vld [vmem:[%s151 + $0xb18] sm:$0xff]
        %v535 = vld [vmem:[%s151 + $0xb20] sm:$0xff]
        %v536 = vld [vmem:[%s151 + $0xb28] sm:$0xff]
        %v537 = vld [vmem:[%s151 + $0xb30] sm:$0xff]
        %v538 = vld [vmem:[%s151 + $0xb38] sm:$0xff]
        %v539 = vld [vmem:[%s151 + $0xb40] sm:$0xff]
        %v540 = vld [vmem:[%s151 + $0xb48] sm:$0xff]
        %v541 = vld [vmem:[%s151 + $0xb50] sm:$0xff]
        %v542 = vld [vmem:[%s151 + $0xb58] sm:$0xff]
        %v543 = vld [vmem:[%s151 + $0xb60] sm:$0xff]
        %v544 = vld [vmem:[%s151 + $0xb68] sm:$0xff]
        %v545 = vld [vmem:[%s151 + $0xb70] sm:$0xff]
        %v546 = vld [vmem:[%s151 + $0xb78] sm:$0xff]
        %v547 = vld [vmem:[%s151 + $0xb80] sm:$0xff]
        %v548 = vld [vmem:[%s151 + $0xb88] sm:$0xff]
        %v549 = vld [vmem:[%s151 + $0xb90] sm:$0xff]
        %v550 = vld [vmem:[%s151 + $0xb98] sm:$0xff]
        %v551 = vld [vmem:[%s151 + $0xba0] sm:$0xff]
        %v552 = vld [vmem:[%s151 + $0xba8] sm:$0xff]
        %v553 = vld [vmem:[%s151 + $0xbb0] sm:$0xff]
        %v554 = vld [vmem:[%s151 + $0xbb8] sm:$0xff]
        %v555 = vld [vmem:[%s151 + $0xbc0] sm:$0xff]
        %v556 = vld [vmem:[%s151 + $0xbc8] sm:$0xff]
        %v557 = vld [vmem:[%s151 + $0xbd0] sm:$0xff]
        %v558 = vld [vmem:[%s151 + $0xbd8] sm:$0xff]
        %v559 = vld [vmem:[%s151 + $0xbe0] sm:$0xff]
        %v560 = vld [vmem:[%s151 + $0xbe8] sm:$0xff]
        %v561 = vld [vmem:[%s151 + $0xbf0] sm:$0xff]
        %v562 = vld [vmem:[%s151 + $0xbf8] sm:$0xff]
        %v563 = vld [vmem:[%s151 + $0xc00] sm:$0xff]
        %v564 = vld [vmem:[%s151 + $0xc08] sm:$0xff]
        %v565 = vld [vmem:[%s151 + $0xc10] sm:$0xff]
        %v566 = vld [vmem:[%s151 + $0xc18] sm:$0xff]
        %v567 = vld [vmem:[%s151 + $0xc20] sm:$0xff]
        %v568 = vld [vmem:[%s151 + $0xc28] sm:$0xff]
        %v569 = vld [vmem:[%s151 + $0xc30] sm:$0xff]
        %v570 = vld [vmem:[%s151 + $0xc38] sm:$0xff]
        %v571 = vld [vmem:[%s151 + $0xc40] sm:$0xff]
        %v572 = vld [vmem:[%s151 + $0xc48] sm:$0xff]
        %v573 = vld [vmem:[%s151 + $0xc50] sm:$0xff]
        %v574 = vld [vmem:[%s151 + $0xc58] sm:$0xff]
        %v575 = vld [vmem:[%s151 + $0xc60] sm:$0xff]
        %v576 = vld [vmem:[%s151 + $0xc68] sm:$0xff]
        %v577 = vld [vmem:[%s151 + $0xc70] sm:$0xff]
        %v578 = vld [vmem:[%s151 + $0xc78] sm:$0xff]
        %v579 = vld [vmem:[%s151 + $0xc80] sm:$0xff]
        %v580 = vld [vmem:[%s151 + $0xc88] sm:$0xff]
        %v581 = vld [vmem:[%s151 + $0xc90] sm:$0xff]
        %v582 = vld [vmem:[%s151 + $0xc98] sm:$0xff]
        %v583 = vld [vmem:[%s151 + $0xca0] sm:$0xff]
        %v584 = vld [vmem:[%s151 + $0xca8] sm:$0xff]
        %v585 = vld [vmem:[%s151 + $0xcb0] sm:$0xff]
        %v586 = vld [vmem:[%s151 + $0xcb8] sm:$0xff]
        %v587 = vld [vmem:[%s151 + $0xcc0] sm:$0xff]
        %v588 = vld [vmem:[%s151 + $0xcc8] sm:$0xff]
        %v589 = vld [vmem:[%s151 + $0xcd0] sm:$0xff]
        %v590 = vld [vmem:[%s151 + $0xcd8] sm:$0xff]
        %v591 = vld [vmem:[%s151 + $0xce0] sm:$0xff]
        %v592 = vld [vmem:[%s151 + $0xce8] sm:$0xff]
        %v593 = vld [vmem:[%s151 + $0xcf0] sm:$0xff]
        %v594 = vld [vmem:[%s151 + $0xcf8] sm:$0xff]
        %v595 = vld [vmem:[%s151 + $0xd00] sm:$0xff]
        %v596 = vld [vmem:[%s151 + $0xd08] sm:$0xff]
        %v597 = vld [vmem:[%s151 + $0xd10] sm:$0xff]
        %v598 = vld [vmem:[%s151 + $0xd18] sm:$0xff]
        %v599 = vld [vmem:[%s151 + $0xd20] sm:$0xff]
        %v600 = vld [vmem:[%s151 + $0xd28] sm:$0xff]
        %v601 = vld [vmem:[%s151 + $0xd30] sm:$0xff]
        %v602 = vld [vmem:[%s151 + $0xd38] sm:$0xff]
        %v603 = vld [vmem:[%s151 + $0xd40] sm:$0xff]
        %v604 = vld [vmem:[%s151 + $0xd48] sm:$0xff]
        %v605 = vld [vmem:[%s151 + $0xd50] sm:$0xff]
        %v606 = vld [vmem:[%s151 + $0xd58] sm:$0xff]
        %v607 = vld [vmem:[%s151 + $0xd60] sm:$0xff]
        %v608 = vld [vmem:[%s151 + $0xd68] sm:$0xff]
        %v609 = vld [vmem:[%s151 + $0xd70] sm:$0xff]
        %v610 = vld [vmem:[%s151 + $0xd78] sm:$0xff]
        %v611 = vld [vmem:[%s151 + $0xd80] sm:$0xff]
        %v612 = vld [vmem:[%s151 + $0xd88] sm:$0xff]
        %v613 = vld [vmem:[%s151 + $0xd90] sm:$0xff]
        %v614 = vld [vmem:[%s151 + $0xd98] sm:$0xff]
        %v615 = vld [vmem:[%s151 + $0xda0] sm:$0xff]
        %v616 = vld [vmem:[%s151 + $0xda8] sm:$0xff]
        %v617 = vld [vmem:[%s151 + $0xdb0] sm:$0xff]
        %v618 = vld [vmem:[%s151 + $0xdb8] sm:$0xff]
        %v619 = vld [vmem:[%s151 + $0xdc0] sm:$0xff]
        %v620 = vld [vmem:[%s151 + $0xdc8] sm:$0xff]
        %v621 = vld [vmem:[%s151 + $0xdd0] sm:$0xff]
        %v622 = vld [vmem:[%s151 + $0xdd8] sm:$0xff]
        %v623 = vld [vmem:[%s151 + $0xde0] sm:$0xff]
        %v624 = vld [vmem:[%s151 + $0xde8] sm:$0xff]
        %v625 = vld [vmem:[%s151 + $0xdf0] sm:$0xff]
        %v626 = vld [vmem:[%s151 + $0xdf8] sm:$0xff]
        %v627 = vld [vmem:[%s151 + $0xe00] sm:$0xff]
        %v628 = vld [vmem:[%s151 + $0xe08] sm:$0xff]
        %v629 = vld [vmem:[%s151 + $0xe10] sm:$0xff]
        %v630 = vld [vmem:[%s151 + $0xe18] sm:$0xff]
        %v631 = vld [vmem:[%s151 + $0xe20] sm:$0xff]
        %v632 = vld [vmem:[%s151 + $0xe28] sm:$0xff]
        %v633 = vld [vmem:[%s151 + $0xe30] sm:$0xff]
        %v634 = vld [vmem:[%s151 + $0xe38] sm:$0xff]
        %v635 = vld [vmem:[%s151 + $0xe40] sm:$0xff]
        %v636 = vld [vmem:[%s151 + $0xe48] sm:$0xff]
        %v637 = vld [vmem:[%s151 + $0xe50] sm:$0xff]
        %v638 = vld [vmem:[%s151 + $0xe58] sm:$0xff]
        %v639 = vld [vmem:[%s151 + $0xe60] sm:$0xff]
        %v640 = vld [vmem:[%s151 + $0xe68] sm:$0xff]
        %v641 = vld [vmem:[%s151 + $0xe70] sm:$0xff]
        %v642 = vld [vmem:[%s151 + $0xe78] sm:$0xff]
        %v643 = vld [vmem:[%s151 + $0xe80] sm:$0xff]
        %v644 = vld [vmem:[%s151 + $0xe88] sm:$0xff]
        %v645 = vld [vmem:[%s151 + $0xe90] sm:$0xff]
        %v646 = vld [vmem:[%s151 + $0xe98] sm:$0xff]
        %v647 = vld [vmem:[%s151 + $0xea0] sm:$0xff]
        %v648 = vld [vmem:[%s151 + $0xea8] sm:$0xff]
        %v649 = vld [vmem:[%s151 + $0xeb0] sm:$0xff]
        %v650 = vld [vmem:[%s151 + $0xeb8] sm:$0xff]
        %v651 = vld [vmem:[%s151 + $0xec0] sm:$0xff]
        %v652 = vld [vmem:[%s151 + $0xec8] sm:$0xff]
        %v653 = vld [vmem:[%s151 + $0xed0] sm:$0xff]
        %v654 = vld [vmem:[%s151 + $0xed8] sm:$0xff]
        %v655 = vld [vmem:[%s151 + $0xee0] sm:$0xff]
        %v656 = vld [vmem:[%s151 + $0xee8] sm:$0xff]
        %v657 = vld [vmem:[%s151 + $0xef0] sm:$0xff]
        %v658 = vld [vmem:[%s151 + $0xef8] sm:$0xff]
        %v659 = vld [vmem:[%s151 + $0xf00] sm:$0xff]
        %v660 = vld [vmem:[%s151 + $0xf08] sm:$0xff]
        %v661 = vld [vmem:[%s151 + $0xf10] sm:$0xff]
        %v662 = vld [vmem:[%s151 + $0xf18] sm:$0xff]
        %v663 = vld [vmem:[%s151 + $0xf20] sm:$0xff]
        %v664 = vld [vmem:[%s151 + $0xf28] sm:$0xff]
        %v665 = vld [vmem:[%s151 + $0xf30] sm:$0xff]
        %v666 = vld [vmem:[%s151 + $0xf38] sm:$0xff]
        %v667 = vld [vmem:[%s151 + $0xf40] sm:$0xff]
        %v668 = vld [vmem:[%s151 + $0xf48] sm:$0xff]
        %v669 = vld [vmem:[%s151 + $0xf50] sm:$0xff]
        %v670 = vld [vmem:[%s151 + $0xf58] sm:$0xff]
        %v671 = vld [vmem:[%s151 + $0xf60] sm:$0xff]
        %v672 = vld [vmem:[%s151 + $0xf68] sm:$0xff]
        %v673 = vld [vmem:[%s151 + $0xf70] sm:$0xff]
        %v674 = vld [vmem:[%s151 + $0xf78] sm:$0xff]
        %v675 = vld [vmem:[%s151 + $0xf80] sm:$0xff]
        %v676 = vld [vmem:[%s151 + $0xf88] sm:$0xff]
        %v677 = vld [vmem:[%s151 + $0xf90] sm:$0xff]
        %v678 = vld [vmem:[%s151 + $0xf98] sm:$0xff]
        %v679 = vld [vmem:[%s151 + $0xfa0] sm:$0xff]
        %v680 = vld [vmem:[%s151 + $0xfa8] sm:$0xff]
        %v681 = vld [vmem:[%s151 + $0xfb0] sm:$0xff]
        %v682 = vld [vmem:[%s151 + $0xfb8] sm:$0xff]
        %v683 = vld [vmem:[%s151 + $0xfc0] sm:$0xff]
        %v684 = vld [vmem:[%s151 + $0xfc8] sm:$0xff]
        %v685 = vld [vmem:[%s151 + $0xfd0] sm:$0xff]
        %v686 = vld [vmem:[%s151 + $0xfd8] sm:$0xff]
        %v687 = vld [vmem:[%s151 + $0xfe0] sm:$0xff]
        %v688 = vld [vmem:[%s151 + $0xfe8] sm:$0xff]
        %v689 = vld [vmem:[%s151 + $0xff0] sm:$0xff]
        %v690 = vld [vmem:[%s151 + $0xff8] sm:$0xff]
        %v692 = vlaneseq
        %v693 = vshrl.u32 %v692, 7
        %v694 = vsub.s32 0, %v693
        %v695 = vrot.slane %v178, %v694
        %v696 = vlaneseq
        %v697 = vshrl.u32 %v696, 7
        %v698 = vsub.s32 1, %v697
        %v699 = vrot.slane %v178, %v698
        %v700 = vlaneseq
        %v701 = vshrl.u32 %v700, 7
        %v702 = vsub.s32 2, %v701
        %v703 = vrot.slane %v178, %v702
        %v704 = vlaneseq
        %v705 = vshrl.u32 %v704, 7
        %v706 = vsub.s32 3, %v705
        %v707 = vrot.slane %v178, %v706
        %v708 = vlaneseq
        %v709 = vshrl.u32 %v708, 7
        %v710 = vsub.s32 4, %v709
        %v711 = vrot.slane %v178, %v710
        %v712 = vlaneseq
        %v713 = vshrl.u32 %v712, 7
        %v714 = vsub.s32 5, %v713
        %v715 = vrot.slane %v178, %v714
        %v716 = vlaneseq
        %v717 = vshrl.u32 %v716, 7
        %v718 = vsub.s32 6, %v717
        %v719 = vrot.slane %v178, %v718
        %v720 = vlaneseq
        %v721 = vshrl.u32 %v720, 7
        %v722 = vsub.s32 7, %v721
        %v723 = vrot.slane %v178, %v722
        %732 = vmatprep.subr.mxu0 %v180
        %733 = vmatpush1.xpose.msra.mxu0 %v179
        %734 = vmatprep.subr.mxu0 %v188
        %735 = vmatpush1.xpose.msra.mxu0 %v187
        %736 = vmatprep.subr.mxu0 %v196
        %737 = vmatpush1.xpose.msra.mxu0 %v195
        %738 = vmatprep.subr.mxu0 %v204
        %739 = vmatpush1.xpose.msra.mxu0 %v203
        %740 = vmatprep.subr.mxu0 %v212
        %741 = vmatpush1.xpose.msra.mxu0 %v211
        %742 = vmatprep.subr.mxu0 %v220
        %743 = vmatpush1.xpose.msra.mxu0 %v219
        %744 = vmatprep.subr.mxu0 %v228
        %745 = vmatpush1.xpose.msra.mxu0 %v227
        %746 = vmatprep.subr.mxu0 %v236
        %747 = vmatpush1.xpose.msra.mxu0 %v235
        %748 = vmatprep.subr.mxu0 %v244
        %749 = vmatpush1.xpose.msra.mxu0 %v243
        %750 = vmatprep.subr.mxu0 %v252
        %751 = vmatpush1.xpose.msra.mxu0 %v251
        %752 = vmatprep.subr.mxu0 %v260
        %753 = vmatpush1.xpose.msra.mxu0 %v259
        %754 = vmatprep.subr.mxu0 %v268
        %755 = vmatpush1.xpose.msra.mxu0 %v267
        %756 = vmatprep.subr.mxu0 %v276
        %757 = vmatpush1.xpose.msra.mxu0 %v275
        %758 = vmatprep.subr.mxu0 %v284
        %759 = vmatpush1.xpose.msra.mxu0 %v283
        %760 = vmatprep.subr.mxu0 %v292
        %761 = vmatpush1.xpose.msra.mxu0 %v291
        %762 = vmatprep.subr.mxu0 %v300
        %763 = vmatpush1.xpose.msra.mxu0 %v299
        %764 = vmatprep.subr.mxu0 %v308
        %765 = vmatpush1.xpose.msra.mxu0 %v307
        %766 = vmatprep.subr.mxu0 %v316
        %767 = vmatpush1.xpose.msra.mxu0 %v315
        %768 = vmatprep.subr.mxu0 %v324
        %769 = vmatpush1.xpose.msra.mxu0 %v323
        %770 = vmatprep.subr.mxu0 %v332
        %771 = vmatpush1.xpose.msra.mxu0 %v331
        %772 = vmatprep.subr.mxu0 %v340
        %773 = vmatpush1.xpose.msra.mxu0 %v339
        %774 = vmatprep.subr.mxu0 %v348
        %775 = vmatpush1.xpose.msra.mxu0 %v347
        %776 = vmatprep.subr.mxu0 %v356
        %777 = vmatpush1.xpose.msra.mxu0 %v355
        %778 = vmatprep.subr.mxu0 %v364
        %779 = vmatpush1.xpose.msra.mxu0 %v363
        %780 = vmatprep.subr.mxu0 %v372
        %781 = vmatpush1.xpose.msra.mxu0 %v371
        %782 = vmatprep.subr.mxu0 %v380
        %783 = vmatpush1.xpose.msra.mxu0 %v379
        %784 = vmatprep.subr.mxu0 %v388
        %785 = vmatpush1.xpose.msra.mxu0 %v387
        %786 = vmatprep.subr.mxu0 %v396
        %787 = vmatpush1.xpose.msra.mxu0 %v395
        %788 = vmatprep.subr.mxu0 %v404
        %789 = vmatpush1.xpose.msra.mxu0 %v403
        %790 = vmatprep.subr.mxu0 %v412
        %791 = vmatpush1.xpose.msra.mxu0 %v411
        %792 = vmatprep.subr.mxu0 %v420
        %793 = vmatpush1.xpose.msra.mxu0 %v419
        %794 = vmatprep.subr.mxu0 %v428
        %795 = vmatpush1.xpose.msra.mxu0 %v427
        %796 = vmatprep.mubr.f32.mxu0 %v699
        %797 = vmatmul.mubr.f32.gmra.mrb[0].mxu0 %v695
        %v798 = vpop.f32.mrb[0].mxu0
        %v799 = vadd.f32 0.0, %v798
        %v800 = vpop.f32.mrb[0].mxu0
        %v801 = vadd.f32 0.0, %v800
        %802 = vdwg.mxu0
        %803 = vmatprep.subr.mxu0 %v182
        %804 = vmatpush1.xpose.msra.mxu0 %v181
        %805 = vmatprep.subr.mxu0 %v190
        %806 = vmatpush1.xpose.msra.mxu0 %v189
        %807 = vmatprep.subr.mxu0 %v198
        %808 = vmatpush1.xpose.msra.mxu0 %v197
        %809 = vmatprep.subr.mxu0 %v206
        %810 = vmatpush1.xpose.msra.mxu0 %v205
        %811 = vmatprep.subr.mxu0 %v214
        %812 = vmatpush1.xpose.msra.mxu0 %v213
        %813 = vmatprep.subr.mxu0 %v222
        %814 = vmatpush1.xpose.msra.mxu0 %v221
        %815 = vmatprep.subr.mxu0 %v230
        %816 = vmatpush1.xpose.msra.mxu0 %v229
        %817 = vmatprep.subr.mxu0 %v238
        %818 = vmatpush1.xpose.msra.mxu0 %v237
        %819 = vmatprep.subr.mxu0 %v246
        %820 = vmatpush1.xpose.msra.mxu0 %v245
        %821 = vmatprep.subr.mxu0 %v254
        %822 = vmatpush1.xpose.msra.mxu0 %v253
        %823 = vmatprep.subr.mxu0 %v262
        %824 = vmatpush1.xpose.msra.mxu0 %v261
        %825 = vmatprep.subr.mxu0 %v270
        %826 = vmatpush1.xpose.msra.mxu0 %v269
        %827 = vmatprep.subr.mxu0 %v278
        %828 = vmatpush1.xpose.msra.mxu0 %v277
        %829 = vmatprep.subr.mxu0 %v286
        %830 = vmatpush1.xpose.msra.mxu0 %v285
        %831 = vmatprep.subr.mxu0 %v294
        %832 = vmatpush1.xpose.msra.mxu0 %v293
        %833 = vmatprep.subr.mxu0 %v302
        %834 = vmatpush1.xpose.msra.mxu0 %v301
        %835 = vmatprep.subr.mxu0 %v310
        %836 = vmatpush1.xpose.msra.mxu0 %v309
        %837 = vmatprep.subr.mxu0 %v318
        %838 = vmatpush1.xpose.msra.mxu0 %v317
        %839 = vmatprep.subr.mxu0 %v326
        %840 = vmatpush1.xpose.msra.mxu0 %v325
        %841 = vmatprep.subr.mxu0 %v334
        %842 = vmatpush1.xpose.msra.mxu0 %v333
        %843 = vmatprep.subr.mxu0 %v342
        %844 = vmatpush1.xpose.msra.mxu0 %v341
        %845 = vmatprep.subr.mxu0 %v350
        %846 = vmatpush1.xpose.msra.mxu0 %v349
        %847 = vmatprep.subr.mxu0 %v358
        %848 = vmatpush1.xpose.msra.mxu0 %v357
        %849 = vmatprep.subr.mxu0 %v366
        %850 = vmatpush1.xpose.msra.mxu0 %v365
        %851 = vmatprep.subr.mxu0 %v374
        %852 = vmatpush1.xpose.msra.mxu0 %v373
        %853 = vmatprep.subr.mxu0 %v382
        %854 = vmatpush1.xpose.msra.mxu0 %v381
        %855 = vmatprep.subr.mxu0 %v390
        %856 = vmatpush1.xpose.msra.mxu0 %v389
        %857 = vmatprep.subr.mxu0 %v398
        %858 = vmatpush1.xpose.msra.mxu0 %v397
        %859 = vmatprep.subr.mxu0 %v406
        %860 = vmatpush1.xpose.msra.mxu0 %v405
        %861 = vmatprep.subr.mxu0 %v414
        %862 = vmatpush1.xpose.msra.mxu0 %v413
        %863 = vmatprep.subr.mxu0 %v422
        %864 = vmatpush1.xpose.msra.mxu0 %v421
        %865 = vmatprep.subr.mxu0 %v430
        %866 = vmatpush1.xpose.msra.mxu0 %v429
        %867 = vmatprep.mubr.f32.mxu0 %v707
        %868 = vmatmul.mubr.f32.gmra.mrb[0].mxu0 %v703
        %v869 = vpop.f32.mrb[0].mxu0
        %v870 = vadd.f32 %v799, %v869
        %v871 = vpop.f32.mrb[0].mxu0
        %v872 = vadd.f32 %v801, %v871
        %873 = vdwg.mxu0
        %874 = vmatprep.subr.mxu0 %v184
        %875 = vmatpush1.xpose.msra.mxu0 %v183
        %876 = vmatprep.subr.mxu0 %v192
        %877 = vmatpush1.xpose.msra.mxu0 %v191
        %878 = vmatprep.subr.mxu0 %v200
        %879 = vmatpush1.xpose.msra.mxu0 %v199
        %880 = vmatprep.subr.mxu0 %v208
        %881 = vmatpush1.xpose.msra.mxu0 %v207
        %882 = vmatprep.subr.mxu0 %v216
        %883 = vmatpush1.xpose.msra.mxu0 %v215
        %884 = vmatprep.subr.mxu0 %v224
        %885 = vmatpush1.xpose.msra.mxu0 %v223
        %886 = vmatprep.subr.mxu0 %v232
        %887 = vmatpush1.xpose.msra.mxu0 %v231
        %888 = vmatprep.subr.mxu0 %v240
        %889 = vmatpush1.xpose.msra.mxu0 %v239
        %890 = vmatprep.subr.mxu0 %v248
        %891 = vmatpush1.xpose.msra.mxu0 %v247
        %892 = vmatprep.subr.mxu0 %v256
        %893 = vmatpush1.xpose.msra.mxu0 %v255
        %894 = vmatprep.subr.mxu0 %v264
        %895 = vmatpush1.xpose.msra.mxu0 %v263
        %896 = vmatprep.subr.mxu0 %v272
        %897 = vmatpush1.xpose.msra.mxu0 %v271
        %898 = vmatprep.subr.mxu0 %v280
        %899 = vmatpush1.xpose.msra.mxu0 %v279
        %900 = vmatprep.subr.mxu0 %v288
        %901 = vmatpush1.xpose.msra.mxu0 %v287
        %902 = vmatprep.subr.mxu0 %v296
        %903 = vmatpush1.xpose.msra.mxu0 %v295
        %904 = vmatprep.subr.mxu0 %v304
        %905 = vmatpush1.xpose.msra.mxu0 %v303
        %906 = vmatprep.subr.mxu0 %v312
        %907 = vmatpush1.xpose.msra.mxu0 %v311
        %908 = vmatprep.subr.mxu0 %v320
        %909 = vmatpush1.xpose.msra.mxu0 %v319
        %910 = vmatprep.subr.mxu0 %v328
        %911 = vmatpush1.xpose.msra.mxu0 %v327
        %912 = vmatprep.subr.mxu0 %v336
        %913 = vmatpush1.xpose.msra.mxu0 %v335
        %914 = vmatprep.subr.mxu0 %v344
        %915 = vmatpush1.xpose.msra.mxu0 %v343
        %916 = vmatprep.subr.mxu0 %v352
        %917 = vmatpush1.xpose.msra.mxu0 %v351
        %918 = vmatprep.subr.mxu0 %v360
        %919 = vmatpush1.xpose.msra.mxu0 %v359
        %920 = vmatprep.subr.mxu0 %v368
        %921 = vmatpush1.xpose.msra.mxu0 %v367
        %922 = vmatprep.subr.mxu0 %v376
        %923 = vmatpush1.xpose.msra.mxu0 %v375
        %924 = vmatprep.subr.mxu0 %v384
        %925 = vmatpush1.xpose.msra.mxu0 %v383
        %926 = vmatprep.subr.mxu0 %v392
        %927 = vmatpush1.xpose.msra.mxu0 %v391
        %928 = vmatprep.subr.mxu0 %v400
        %929 = vmatpush1.xpose.msra.mxu0 %v399
        %930 = vmatprep.subr.mxu0 %v408
        %931 = vmatpush1.xpose.msra.mxu0 %v407
        %932 = vmatprep.subr.mxu0 %v416
        %933 = vmatpush1.xpose.msra.mxu0 %v415
        %934 = vmatprep.subr.mxu0 %v424
        %935 = vmatpush1.xpose.msra.mxu0 %v423
        %936 = vmatprep.subr.mxu0 %v432
        %937 = vmatpush1.xpose.msra.mxu0 %v431
        %938 = vmatprep.mubr.f32.mxu0 %v715
        %939 = vmatmul.mubr.f32.gmra.mrb[0].mxu0 %v711
        %v940 = vpop.f32.mrb[0].mxu0
        %v941 = vadd.f32 %v870, %v940
        %v942 = vpop.f32.mrb[0].mxu0
        %v943 = vadd.f32 %v872, %v942
        %944 = vdwg.mxu0
        %945 = vmatprep.subr.mxu0 %v186
        %946 = vmatpush1.xpose.msra.mxu0 %v185
        %947 = vmatprep.subr.mxu0 %v194
        %948 = vmatpush1.xpose.msra.mxu0 %v193
        %949 = vmatprep.subr.mxu0 %v202
        %950 = vmatpush1.xpose.msra.mxu0 %v201
        %951 = vmatprep.subr.mxu0 %v210
        %952 = vmatpush1.xpose.msra.mxu0 %v209
        %953 = vmatprep.subr.mxu0 %v218
        %954 = vmatpush1.xpose.msra.mxu0 %v217
        %955 = vmatprep.subr.mxu0 %v226
        %956 = vmatpush1.xpose.msra.mxu0 %v225
        %957 = vmatprep.subr.mxu0 %v234
        %958 = vmatpush1.xpose.msra.mxu0 %v233
        %959 = vmatprep.subr.mxu0 %v242
        %960 = vmatpush1.xpose.msra.mxu0 %v241
        %961 = vmatprep.subr.mxu0 %v250
        %962 = vmatpush1.xpose.msra.mxu0 %v249
        %963 = vmatprep.subr.mxu0 %v258
        %964 = vmatpush1.xpose.msra.mxu0 %v257
        %965 = vmatprep.subr.mxu0 %v266
        %966 = vmatpush1.xpose.msra.mxu0 %v265
        %967 = vmatprep.subr.mxu0 %v274
        %968 = vmatpush1.xpose.msra.mxu0 %v273
        %969 = vmatprep.subr.mxu0 %v282
        %970 = vmatpush1.xpose.msra.mxu0 %v281
        %971 = vmatprep.subr.mxu0 %v290
        %972 = vmatpush1.xpose.msra.mxu0 %v289
        %973 = vmatprep.subr.mxu0 %v298
        %974 = vmatpush1.xpose.msra.mxu0 %v297
        %975 = vmatprep.subr.mxu0 %v306
        %976 = vmatpush1.xpose.msra.mxu0 %v305
        %977 = vmatprep.subr.mxu0 %v314
        %978 = vmatpush1.xpose.msra.mxu0 %v313
        %979 = vmatprep.subr.mxu0 %v322
        %980 = vmatpush1.xpose.msra.mxu0 %v321
        %981 = vmatprep.subr.mxu0 %v330
        %982 = vmatpush1.xpose.msra.mxu0 %v329
        %983 = vmatprep.subr.mxu0 %v338
        %984 = vmatpush1.xpose.msra.mxu0 %v337
        %985 = vmatprep.subr.mxu0 %v346
        %986 = vmatpush1.xpose.msra.mxu0 %v345
        %987 = vmatprep.subr.mxu0 %v354
        %988 = vmatpush1.xpose.msra.mxu0 %v353
        %989 = vmatprep.subr.mxu0 %v362
        %990 = vmatpush1.xpose.msra.mxu0 %v361
        %991 = vmatprep.subr.mxu0 %v370
        %992 = vmatpush1.xpose.msra.mxu0 %v369
        %993 = vmatprep.subr.mxu0 %v378
        %994 = vmatpush1.xpose.msra.mxu0 %v377
        %995 = vmatprep.subr.mxu0 %v386
        %996 = vmatpush1.xpose.msra.mxu0 %v385
        %997 = vmatprep.subr.mxu0 %v394
        %998 = vmatpush1.xpose.msra.mxu0 %v393
        %999 = vmatprep.subr.mxu0 %v402
        %1000 = vmatpush1.xpose.msra.mxu0 %v401
        %1001 = vmatprep.subr.mxu0 %v410
        %1002 = vmatpush1.xpose.msra.mxu0 %v409
        %1003 = vmatprep.subr.mxu0 %v418
        %1004 = vmatpush1.xpose.msra.mxu0 %v417
        %1005 = vmatprep.subr.mxu0 %v426
        %1006 = vmatpush1.xpose.msra.mxu0 %v425
        %1007 = vmatprep.subr.mxu0 %v434
        %1008 = vmatpush1.xpose.msra.mxu0 %v433
        %1009 = vmatprep.mubr.f32.mxu0 %v723
        %1010 = vmatmul.mubr.f32.gmra.mrb[0].mxu0 %v719
        %v1011 = vpop.f32.mrb[0].mxu0
        %v1012 = vadd.f32 %v941, %v1011
        %v1013 = vpop.f32.mrb[0].mxu0
        %v1014 = vadd.f32 %v943, %v1013
        %1015 = vdwg.mxu0
        %1016 = vmatprep.subr.mxu0 %v436
        %1017 = vmatpush1.xpose.msra.mxu0 %v435
        %1018 = vmatprep.subr.mxu0 %v444
        %1019 = vmatpush1.xpose.msra.mxu0 %v443
        %1020 = vmatprep.subr.mxu0 %v452
        %1021 = vmatpush1.xpose.msra.mxu0 %v451
        %1022 = vmatprep.subr.mxu0 %v460
        %1023 = vmatpush1.xpose.msra.mxu0 %v459
        %1024 = vmatprep.subr.mxu0 %v468
        %1025 = vmatpush1.xpose.msra.mxu0 %v467
        %1026 = vmatprep.subr.mxu0 %v476
        %1027 = vmatpush1.xpose.msra.mxu0 %v475
        %1028 = vmatprep.subr.mxu0 %v484
        %1029 = vmatpush1.xpose.msra.mxu0 %v483
        %1030 = vmatprep.subr.mxu0 %v492
        %1031 = vmatpush1.xpose.msra.mxu0 %v491
        %1032 = vmatprep.subr.mxu0 %v500
        %1033 = vmatpush1.xpose.msra.mxu0 %v499
        %1034 = vmatprep.subr.mxu0 %v508
        %1035 = vmatpush1.xpose.msra.mxu0 %v507
        %1036 = vmatprep.subr.mxu0 %v516
        %1037 = vmatpush1.xpose.msra.mxu0 %v515
        %1038 = vmatprep.subr.mxu0 %v524
        %1039 = vmatpush1.xpose.msra.mxu0 %v523
        %1040 = vmatprep.subr.mxu0 %v532
        %1041 = vmatpush1.xpose.msra.mxu0 %v531
        %1042 = vmatprep.subr.mxu0 %v540
        %1043 = vmatpush1.xpose.msra.mxu0 %v539
        %1044 = vmatprep.subr.mxu0 %v548
        %1045 = vmatpush1.xpose.msra.mxu0 %v547
        %1046 = vmatprep.subr.mxu0 %v556
        %1047 = vmatpush1.xpose.msra.mxu0 %v555
        %1048 = vmatprep.subr.mxu0 %v564
        %1049 = vmatpush1.xpose.msra.mxu0 %v563
        %1050 = vmatprep.subr.mxu0 %v572
        %1051 = vmatpush1.xpose.msra.mxu0 %v571
        %1052 = vmatprep.subr.mxu0 %v580
        %1053 = vmatpush1.xpose.msra.mxu0 %v579
        %1054 = vmatprep.subr.mxu0 %v588
        %1055 = vmatpush1.xpose.msra.mxu0 %v587
        %1056 = vmatprep.subr.mxu0 %v596
        %1057 = vmatpush1.xpose.msra.mxu0 %v595
        %1058 = vmatprep.subr.mxu0 %v604
        %1059 = vmatpush1.xpose.msra.mxu0 %v603
        %1060 = vmatprep.subr.mxu0 %v612
        %1061 = vmatpush1.xpose.msra.mxu0 %v611
        %1062 = vmatprep.subr.mxu0 %v620
        %1063 = vmatpush1.xpose.msra.mxu0 %v619
        %1064 = vmatprep.subr.mxu0 %v628
        %1065 = vmatpush1.xpose.msra.mxu0 %v627
        %1066 = vmatprep.subr.mxu0 %v636
        %1067 = vmatpush1.xpose.msra.mxu0 %v635
        %1068 = vmatprep.subr.mxu0 %v644
        %1069 = vmatpush1.xpose.msra.mxu0 %v643
        %1070 = vmatprep.subr.mxu0 %v652
        %1071 = vmatpush1.xpose.msra.mxu0 %v651
        %1072 = vmatprep.subr.mxu0 %v660
        %1073 = vmatpush1.xpose.msra.mxu0 %v659
        %1074 = vmatprep.subr.mxu0 %v668
        %1075 = vmatpush1.xpose.msra.mxu0 %v667
        %1076 = vmatprep.subr.mxu0 %v676
        %1077 = vmatpush1.xpose.msra.mxu0 %v675
        %1078 = vmatprep.subr.mxu0 %v684
        %1079 = vmatpush1.xpose.msra.mxu0 %v683
        %1080 = vmatprep.mubr.f32.mxu0 %v699
        %1081 = vmatmul.mubr.f32.gmra.mrb[0].mxu0 %v695
        %v1082 = vpop.f32.mrb[0].mxu0
        %v1083 = vadd.f32 0.0, %v1082
        %v1084 = vpop.f32.mrb[0].mxu0
        %v1085 = vadd.f32 0.0, %v1084
        %1086 = vdwg.mxu0
        %1087 = vmatprep.subr.mxu0 %v438
        %1088 = vmatpush1.xpose.msra.mxu0 %v437
        %1089 = vmatprep.subr.mxu0 %v446
        %1090 = vmatpush1.xpose.msra.mxu0 %v445
        %1091 = vmatprep.subr.mxu0 %v454
        %1092 = vmatpush1.xpose.msra.mxu0 %v453
        %1093 = vmatprep.subr.mxu0 %v462
        %1094 = vmatpush1.xpose.msra.mxu0 %v461
        %1095 = vmatprep.subr.mxu0 %v470
        %1096 = vmatpush1.xpose.msra.mxu0 %v469
        %1097 = vmatprep.subr.mxu0 %v478
        %1098 = vmatpush1.xpose.msra.mxu0 %v477
        %1099 = vmatprep.subr.mxu0 %v486
        %1100 = vmatpush1.xpose.msra.mxu0 %v485
        %1101 = vmatprep.subr.mxu0 %v494
        %1102 = vmatpush1.xpose.msra.mxu0 %v493
        %1103 = vmatprep.subr.mxu0 %v502
        %1104 = vmatpush1.xpose.msra.mxu0 %v501
        %1105 = vmatprep.subr.mxu0 %v510
        %1106 = vmatpush1.xpose.msra.mxu0 %v509
        %1107 = vmatprep.subr.mxu0 %v518
        %1108 = vmatpush1.xpose.msra.mxu0 %v517
        %1109 = vmatprep.subr.mxu0 %v526
        %1110 = vmatpush1.xpose.msra.mxu0 %v525
        %1111 = vmatprep.subr.mxu0 %v534
        %1112 = vmatpush1.xpose.msra.mxu0 %v533
        %1113 = vmatprep.subr.mxu0 %v542
        %1114 = vmatpush1.xpose.msra.mxu0 %v541
        %1115 = vmatprep.subr.mxu0 %v550
        %1116 = vmatpush1.xpose.msra.mxu0 %v549
        %1117 = vmatprep.subr.mxu0 %v558
        %1118 = vmatpush1.xpose.msra.mxu0 %v557
        %1119 = vmatprep.subr.mxu0 %v566
        %1120 = vmatpush1.xpose.msra.mxu0 %v565
        %1121 = vmatprep.subr.mxu0 %v574
        %1122 = vmatpush1.xpose.msra.mxu0 %v573
        %1123 = vmatprep.subr.mxu0 %v582
        %1124 = vmatpush1.xpose.msra.mxu0 %v581
        %1125 = vmatprep.subr.mxu0 %v590
        %1126 = vmatpush1.xpose.msra.mxu0 %v589
        %1127 = vmatprep.subr.mxu0 %v598
        %1128 = vmatpush1.xpose.msra.mxu0 %v597
        %1129 = vmatprep.subr.mxu0 %v606
        %1130 = vmatpush1.xpose.msra.mxu0 %v605
        %1131 = vmatprep.subr.mxu0 %v614
        %1132 = vmatpush1.xpose.msra.mxu0 %v613
        %1133 = vmatprep.subr.mxu0 %v622
        %1134 = vmatpush1.xpose.msra.mxu0 %v621
        %1135 = vmatprep.subr.mxu0 %v630
        %1136 = vmatpush1.xpose.msra.mxu0 %v629
        %1137 = vmatprep.subr.mxu0 %v638
        %1138 = vmatpush1.xpose.msra.mxu0 %v637
        %1139 = vmatprep.subr.mxu0 %v646
        %1140 = vmatpush1.xpose.msra.mxu0 %v645
        %1141 = vmatprep.subr.mxu0 %v654
        %1142 = vmatpush1.xpose.msra.mxu0 %v653
        %1143 = vmatprep.subr.mxu0 %v662
        %1144 = vmatpush1.xpose.msra.mxu0 %v661
        %1145 = vmatprep.subr.mxu0 %v670
        %1146 = vmatpush1.xpose.msra.mxu0 %v669
        %1147 = vmatprep.subr.mxu0 %v678
        %1148 = vmatpush1.xpose.msra.mxu0 %v677
        %1149 = vmatprep.subr.mxu0 %v686
        %1150 = vmatpush1.xpose.msra.mxu0 %v685
        %1151 = vmatprep.mubr.f32.mxu0 %v707
        %1152 = vmatmul.mubr.f32.gmra.mrb[0].mxu0 %v703
        %v1153 = vpop.f32.mrb[0].mxu0
        %v1154 = vadd.f32 %v1083, %v1153
        %v1155 = vpop.f32.mrb[0].mxu0
        %v1156 = vadd.f32 %v1085, %v1155
        %1157 = vdwg.mxu0
        %1158 = vmatprep.subr.mxu0 %v440
        %1159 = vmatpush1.xpose.msra.mxu0 %v439
        %1160 = vmatprep.subr.mxu0 %v448
        %1161 = vmatpush1.xpose.msra.mxu0 %v447
        %1162 = vmatprep.subr.mxu0 %v456
        %1163 = vmatpush1.xpose.msra.mxu0 %v455
        %1164 = vmatprep.subr.mxu0 %v464
        %1165 = vmatpush1.xpose.msra.mxu0 %v463
        %1166 = vmatprep.subr.mxu0 %v472
        %1167 = vmatpush1.xpose.msra.mxu0 %v471
        %1168 = vmatprep.subr.mxu0 %v480
        %1169 = vmatpush1.xpose.msra.mxu0 %v479
        %1170 = vmatprep.subr.mxu0 %v488
        %1171 = vmatpush1.xpose.msra.mxu0 %v487
        %1172 = vmatprep.subr.mxu0 %v496
        %1173 = vmatpush1.xpose.msra.mxu0 %v495
        %1174 = vmatprep.subr.mxu0 %v504
        %1175 = vmatpush1.xpose.msra.mxu0 %v503
        %1176 = vmatprep.subr.mxu0 %v512
        %1177 = vmatpush1.xpose.msra.mxu0 %v511
        %1178 = vmatprep.subr.mxu0 %v520
        %1179 = vmatpush1.xpose.msra.mxu0 %v519
        %1180 = vmatprep.subr.mxu0 %v528
        %1181 = vmatpush1.xpose.msra.mxu0 %v527
        %1182 = vmatprep.subr.mxu0 %v536
        %1183 = vmatpush1.xpose.msra.mxu0 %v535
        %1184 = vmatprep.subr.mxu0 %v544
        %1185 = vmatpush1.xpose.msra.mxu0 %v543
        %1186 = vmatprep.subr.mxu0 %v552
        %1187 = vmatpush1.xpose.msra.mxu0 %v551
        %1188 = vmatprep.subr.mxu0 %v560
        %1189 = vmatpush1.xpose.msra.mxu0 %v559
        %1190 = vmatprep.subr.mxu0 %v568
        %1191 = vmatpush1.xpose.msra.mxu0 %v567
        %1192 = vmatprep.subr.mxu0 %v576
        %1193 = vmatpush1.xpose.msra.mxu0 %v575
        %1194 = vmatprep.subr.mxu0 %v584
        %1195 = vmatpush1.xpose.msra.mxu0 %v583
        %1196 = vmatprep.subr.mxu0 %v592
        %1197 = vmatpush1.xpose.msra.mxu0 %v591
        %1198 = vmatprep.subr.mxu0 %v600
        %1199 = vmatpush1.xpose.msra.mxu0 %v599
        %1200 = vmatprep.subr.mxu0 %v608
        %1201 = vmatpush1.xpose.msra.mxu0 %v607
        %1202 = vmatprep.subr.mxu0 %v616
        %1203 = vmatpush1.xpose.msra.mxu0 %v615
        %1204 = vmatprep.subr.mxu0 %v624
        %1205 = vmatpush1.xpose.msra.mxu0 %v623
        %1206 = vmatprep.subr.mxu0 %v632
        %1207 = vmatpush1.xpose.msra.mxu0 %v631
        %1208 = vmatprep.subr.mxu0 %v640
        %1209 = vmatpush1.xpose.msra.mxu0 %v639
        %1210 = vmatprep.subr.mxu0 %v648
        %1211 = vmatpush1.xpose.msra.mxu0 %v647
        %1212 = vmatprep.subr.mxu0 %v656
        %1213 = vmatpush1.xpose.msra.mxu0 %v655
        %1214 = vmatprep.subr.mxu0 %v664
        %1215 = vmatpush1.xpose.msra.mxu0 %v663
        %1216 = vmatprep.subr.mxu0 %v672
        %1217 = vmatpush1.xpose.msra.mxu0 %v671
        %1218 = vmatprep.subr.mxu0 %v680
        %1219 = vmatpush1.xpose.msra.mxu0 %v679
        %1220 = vmatprep.subr.mxu0 %v688
        %1221 = vmatpush1.xpose.msra.mxu0 %v687
        %1222 = vmatprep.mubr.f32.mxu0 %v715
        %1223 = vmatmul.mubr.f32.gmra.mrb[0].mxu0 %v711
        %v1224 = vpop.f32.mrb[0].mxu0
        %v1225 = vadd.f32 %v1154, %v1224
        %v1226 = vpop.f32.mrb[0].mxu0
        %v1227 = vadd.f32 %v1156, %v1226
        %1228 = vdwg.mxu0
        %1229 = vmatprep.subr.mxu0 %v442
        %1230 = vmatpush1.xpose.msra.mxu0 %v441
        %1231 = vmatprep.subr.mxu0 %v450
        %1232 = vmatpush1.xpose.msra.mxu0 %v449
        %1233 = vmatprep.subr.mxu0 %v458
        %1234 = vmatpush1.xpose.msra.mxu0 %v457
        %1235 = vmatprep.subr.mxu0 %v466
        %1236 = vmatpush1.xpose.msra.mxu0 %v465
        %1237 = vmatprep.subr.mxu0 %v474
        %1238 = vmatpush1.xpose.msra.mxu0 %v473
        %1239 = vmatprep.subr.mxu0 %v482
        %1240 = vmatpush1.xpose.msra.mxu0 %v481
        %1241 = vmatprep.subr.mxu0 %v490
        %1242 = vmatpush1.xpose.msra.mxu0 %v489
        %1243 = vmatprep.subr.mxu0 %v498
        %1244 = vmatpush1.xpose.msra.mxu0 %v497
        %1245 = vmatprep.subr.mxu0 %v506
        %1246 = vmatpush1.xpose.msra.mxu0 %v505
        %1247 = vmatprep.subr.mxu0 %v514
        %1248 = vmatpush1.xpose.msra.mxu0 %v513
        %1249 = vmatprep.subr.mxu0 %v522
        %1250 = vmatpush1.xpose.msra.mxu0 %v521
        %1251 = vmatprep.subr.mxu0 %v530
        %1252 = vmatpush1.xpose.msra.mxu0 %v529
        %1253 = vmatprep.subr.mxu0 %v538
        %1254 = vmatpush1.xpose.msra.mxu0 %v537
        %1255 = vmatprep.subr.mxu0 %v546
        %1256 = vmatpush1.xpose.msra.mxu0 %v545
        %1257 = vmatprep.subr.mxu0 %v554
        %1258 = vmatpush1.xpose.msra.mxu0 %v553
        %1259 = vmatprep.subr.mxu0 %v562
        %1260 = vmatpush1.xpose.msra.mxu0 %v561
        %1261 = vmatprep.subr.mxu0 %v570
        %1262 = vmatpush1.xpose.msra.mxu0 %v569
        %1263 = vmatprep.subr.mxu0 %v578
        %1264 = vmatpush1.xpose.msra.mxu0 %v577
        %1265 = vmatprep.subr.mxu0 %v586
        %1266 = vmatpush1.xpose.msra.mxu0 %v585
        %1267 = vmatprep.subr.mxu0 %v594
        %1268 = vmatpush1.xpose.msra.mxu0 %v593
        %1269 = vmatprep.subr.mxu0 %v602
        %1270 = vmatpush1.xpose.msra.mxu0 %v601
        %1271 = vmatprep.subr.mxu0 %v610
        %1272 = vmatpush1.xpose.msra.mxu0 %v609
        %1273 = vmatprep.subr.mxu0 %v618
        %1274 = vmatpush1.xpose.msra.mxu0 %v617
        %1275 = vmatprep.subr.mxu0 %v626
        %1276 = vmatpush1.xpose.msra.mxu0 %v625
        %1277 = vmatprep.subr.mxu0 %v634
        %1278 = vmatpush1.xpose.msra.mxu0 %v633
        %1279 = vmatprep.subr.mxu0 %v642
        %1280 = vmatpush1.xpose.msra.mxu0 %v641
        %1281 = vmatprep.subr.mxu0 %v650
        %1282 = vmatpush1.xpose.msra.mxu0 %v649
        %1283 = vmatprep.subr.mxu0 %v658
        %1284 = vmatpush1.xpose.msra.mxu0 %v657
        %1285 = vmatprep.subr.mxu0 %v666
        %1286 = vmatpush1.xpose.msra.mxu0 %v665
        %1287 = vmatprep.subr.mxu0 %v674
        %1288 = vmatpush1.xpose.msra.mxu0 %v673
        %1289 = vmatprep.subr.mxu0 %v682
        %1290 = vmatpush1.xpose.msra.mxu0 %v681
        %1291 = vmatprep.subr.mxu0 %v690
        %1292 = vmatpush1.xpose.msra.mxu0 %v689
        %1293 = vmatprep.mubr.f32.mxu0 %v723
        %1294 = vmatmul.mubr.f32.gmra.mrb[0].mxu0 %v719
        %v1295 = vpop.f32.mrb[0].mxu0
        %v1296 = vadd.f32 %v1225, %v1295
        %v1297 = vpop.f32.mrb[0].mxu0
        %v1298 = vadd.f32 %v1227, %v1297
        %1299 = vdwg.mxu0
        %v1304 = vcombine.low %v1012, %v1014
        %v1305 = vcombine.low %v1296, %v1298
        %v1307 = vunpack.c.l.s4 1966171168
        %v1308 = vunpack.c.0.s8 %v1307
        %v1309 = vlaneseq
        %v1310 = vshrl.u32 %v1309, 7
        %v1311 = vsub.s32 %v1308, %v1310
        %v1312 = vrot.slane %v1304, %v1311
        %v1314 = vunpack.c.l.s4 1966171168
        %v1315 = vunpack.c.0.s8 %v1314
        %v1316 = vlaneseq
        %v1317 = vshrl.u32 %v1316, 7
        %v1318 = vsub.s32 %v1315, %v1317
        %v1319 = vrot.slane %v1305, %v1318
        %v1320 = vcombine.low %v1312, %v1319
        %v1322 = vunpack.c.l.s4 1966171168
        %v1323 = vunpack.c.0.s8 %v1322
        %v1324 = vlaneseq
        %v1325 = vshrl.u32 %v1324, 7
        %v1326 = vsub.s32 %v1323, %v1325
        %v1327 = vrot.slane %v1320, %v1326
        %v1329 = vlaneseq
        %vm1330 = vcmp.ge.s32.totalorder %v1329, 0
        %vm1331 = vcmp.lt.s32.totalorder %v1329, 512
        %vm1332 = vmand %vm1330, %vm1331
        %1333 = vst.msk [vmem:[%s175] sm:$0xf] %vm1332, %v1327
        %s1334 = sand.u32 %s75, 1
        %s1335 = scalar_lea.sflag [#allocation4], %s1334
        %s1336 = sand.u32 %s75, 1
        %s1337 = smul.addr %s1336, 4
        %s1338 = scalar_lea.vmem [#allocation7], %s1337
        // Predicated region
        $region37: #{tpu_custom_call.1} parent=27 // pred_check
          %p1339 = pneg %p85
        $region38: #{tpu_custom_call.1} parent=27 // pred_check_branch
          %1341 = sbr.rel (%p1339) target = $region40
        $region39: #{tpu_custom_call.1} parent=27 // pred_region
          %s1342 = smul.u32 4, %s20
          %s1344 = ssub.s32 64, 64
          %1345 = vsyncadd %s1335, %s1344
          %s1346 = smul.addr %s1342, 16
          %s1347 = scalar_lea.hbm %s2, %s1346
          %s1349 = sshll.u32 %s1338, 4
          %s1350 = int_to_ptr.vmem [resolvable:$true] %s1349
          %1352 = dma.vmem_to_hbm [thread:$0]  %s1350, 64, %s1347, %s1335
        $region40: #{tpu_custom_call.1} parent=27 // pred_fallthru
          _
      $region28: #{tpu_custom_call.1} parent=5 // pred_fallthru
        _
      %p1353 = scmp.le.s32.totalorder 2, %s15
      // Predicated region
      $region41: #{tpu_custom_call.1} parent=5 // pred_check
        %p1354 = pneg %p1353
      $region42: #{tpu_custom_call.1} parent=5 // pred_check_branch
        %1356 = sbr.rel (%p1354) target = $region44
      $region43: #{tpu_custom_call.1} parent=5 // pred_region
        %s1357 = ssub.s32 %s15, 2
        // Predicated region
        $region45: #{tpu_custom_call.1} parent=43 // pred_check
          %p1358 = pneg %p91
        $region46: #{tpu_custom_call.1} parent=43 // pred_check_branch
          %1360 = sbr.rel (%p1358) target = $region48
        $region47: #{tpu_custom_call.1} parent=43 // pred_region
          %s1361 = sand.u32 %s76, 1
          %s1362 = scalar_lea.sflag [#allocation4], %s1361
          %s1363 = sand.u32 %s76, 1
          %s1364 = smul.addr %s1363, 4
          %s1365 = scalar_lea.vmem [#allocation7], %s1364
          %1366 = dma.done %s1362, 64
        $region48: #{tpu_custom_call.1} parent=43 // pred_fallthru
          _
      $region44: #{tpu_custom_call.1} parent=5 // pred_fallthru
        _
    $region6: #{tpu_custom_call.1} parent=1 // loop_footer
      %s19 = sadd.s32 1, %s15
    $region7: #{tpu_custom_call.1} parent=1 // loop_footer_branch
      %14 = sbr.rel target = $region3
    $region8: #{tpu_custom_call.1} parent=1 // loop_exit
      _
    %1367 = vsyncpa [#allocation3], 1
    %s1368 = scalar_lea.sflag [#allocation3], 1
    %1369 = vsyncpa %s1368, 1
    %1370 = vsyncpa [#allocation6], 1
    %1371 = vsyncpa [#allocation4], 1
    %s1372 = scalar_lea.sflag [#allocation4], 1
    %1373 = vsyncpa %s1372, 1

</llo_original>
